<compile_context>
chip_gen: v5e
topology: v5e:2x2
jax: 0.10.0
libtpu: 0.0.40
codegen_flags: <defaults>
</compile_context>

<pallas_src>
import jax
import jax.numpy as jnp
from jax import lax
from jax.experimental import pallas as pl
from jax.experimental.pallas import tpu as pltpu

N_LAYERS = 1      # see NOTE above
BIL = 3           # bil_filt_size
TM_MAX = 8192     # sites per grid step on the Mg==K path (sweep 4096-16384)


def _round_up(a, b):
    return ((a + b - 1) // b) * b


def _num_tensorcores():
    """Best-effort TensorCore count of device 0.  Only v7x has 2 TCs sharing
    the grid under dimension_semantics=("parallel",); v5e/v6e report 1."""
    try:
        d = jax.devices()[0]
        for attr in ("num_cores", "core_count"):
            v = getattr(d, attr, None)
            if isinstance(v, int) and v > 0:
                return v
    except Exception:
        pass
    return 1


def _pick_tm(k):
    """Sites per grid step: as large as possible (amortize the ~0.35us/step
    pipeline cost); clamp so every TensorCore gets >=1 step only when the chip
    actually has more than one (v7x); keep a multiple of 8 unless one block
    covers all of K (block dim == array dim is always legal)."""
    ncores = _num_tensorcores()
    tm = TM_MAX
    if ncores > 1:
        tm = min(tm, _round_up(-(-k // ncores), 8))
    return k if tm >= k else tm


def _maybe_vmem_limit(est_bytes):
    """Raise the scoped-VMEM limit only when the estimate needs it (keeps the
    small-shape path on compiler defaults; cap well under v7x's 64 MiB)."""
    if est_bytes > 12 * 1024 * 1024:
        return min(2 * est_bytes + (8 << 20), 52 * 1024 * 1024)
    return None


def _conv3d_as_matrix(w, s):
    """Valid 1->1 Conv3d (3x3x3, no bias) on an s^3 volume as a matmul matrix
    M of shape (s^3, (s-2)^3):  in_flat @ M == flatten(conv3d(in))  (C order DHW)."""
    so = s - 2
    rows, cols, widx = [], [], []
    for od in range(so):
        for oh in range(so):
            for ow in range(so):
                c = (od * so + oh) * so + ow
                for kd in range(3):
                    for kh in range(3):
                        for kw in range(3):
                            rows.append(((od + kd) * s + (oh + kh)) * s + (ow + kw))
                            cols.append(c)
                            widx.append((kd * 3 + kh) * 3 + kw)
    M = jnp.zeros((s ** 3, so ** 3), jnp.float32)
    return M.at[jnp.asarray(rows), jnp.asarray(cols)].set(
        w.reshape(-1)[jnp.asarray(widx)])


# --------------------------- Pallas kernels ---------------------------------

def _jbf_kernel(g_ref, xp_ref, wr_ref, b_ref, o_ref):
    # weights = dk * relu(conv(guide)) + eps, with dk (>=0) folded per-column
    # into wr/b in the wrapper.  All matmul operands are f32 (MXU f32 passes).
    w = jnp.maximum(
        jnp.dot(g_ref[...], wr_ref[...], preferred_element_type=jnp.float32)
        + b_ref[...], 0.0) + 1e-10                                  # (TM, 27) f32
    xp = xp_ref[...].astype(jnp.float32)                            # (TM, 27)
    num = jnp.sum(w * xp, axis=-1, keepdims=True)                   # (TM, 1)
    den = jnp.sum(w, axis=-1, keepdims=True)                        # >= 2.7e-9
    o_ref[...] = num * pl.reciprocal(den, approx=True)


def _jbf_shared_kernel(wn_ref, x_ref, o_ref):
    # Mg == 1 fast path: the bilateral weights are one constant, pre-normalized
    # 27-vector, so the filter is a plain 3x3x3 weighted average.  The padded
    # x volume of one (b, c) is the block and stays resident across the depth
    # grid axis (its index_map ignores j), so x is DMA'd once per (b, c) --
    # no 27x-duplicated unfold is ever materialized on this path.
    H = o_ref.shape[2]
    W = o_ref.shape[3]
    od = pl.program_id(1)
    acc = jnp.zeros((H, W), jnp.float32)
    t = 0
    for kd in range(BIL):
        sl = x_ref[0, od + kd]                                      # (H+2, W+2) f32
        for kh in range(BIL):
            for kw in range(BIL):
                acc = acc + wn_ref[t] * sl[kh:kh + H, kw:kw + W]
                t += 1
    o_ref[0, 0] = acc


# ------------------------------ wrapper --------------------------------------

def jbf_block_forward(x, domain_neighbor, guide_im, params):
    """Pallas implementation of JBF_block.forward (n_layers=1, bil_filt_size=3)."""
    assert domain_neighbor.shape[2] - N_LAYERS * 2 >= BIL
    for dim in (2, 3, 4):
        assert guide_im.shape[dim] == domain_neighbor.shape[dim]
    assert domain_neighbor.shape[0] == 1  # single spatial kernel (JBFnet usage)

    B, C, D, H, W = x.shape
    Do = D - N_LAYERS * 2
    mat_size = (B, C, Do, H, W)
    s = domain_neighbor.shape[2]
    n_taps = BIL ** 3
    # the conv output must broadcast against the 3^3 unfolded patches
    assert s - 2 * N_LAYERS == BIL

    # ---- glue: conv weights as matmul matrices (biases kept separate) ----
    (wr_w, wr_b), = params["range"]
    (wd_w, wd_b), = params["domain"]
    Wr = _conv3d_as_matrix(wr_w, s)                       # (s^3, 27) f32
    Wd = _conv3d_as_matrix(wd_w, s)

    # Domain kernel: one constant row, computed once here.  dk >= 0 (ReLU
    # output), which is what makes the fold into Wr / bias legal.
    dn = domain_neighbor.reshape(1, s ** 3).astype(jnp.float32)
    dk = jnp.maximum(dn @ Wd + wd_b, 0.0)                 # (1, 27) f32, >= 0
    Wrp = Wr * dk                                         # (s^3, 27) f32 (kept f32)
    b_dk = (dk * wr_b).reshape(1, n_taps)                 # (1, 27) f32

    K = B * C * Do * H * W
    Mg = guide_im.shape[0]
    assert Mg in (1, K)
    pad = BIL // 2

    if Mg == 1:
        # -------- shared guide: constant weights + spatial-conv kernel --------
        g1 = guide_im.reshape(1, s ** 3).astype(jnp.float32)
        w_row = jnp.maximum(g1 @ Wrp + b_dk, 0.0) + 1e-10            # (1, 27)
        wn = (w_row / jnp.sum(w_row)).reshape(n_taps, 1)             # normalized f32

        BC = B * C
        Hp, Wp = H + 2 * pad, W + 2 * pad
        xpad = jnp.pad(x.reshape(BC, D, H, W).astype(jnp.float32),
                       ((0, 0), (0, 0), (pad, pad), (pad, pad)))

        est = 2 * D * _round_up(Hp, 8) * _round_up(Wp, 128) * 4
        out = pl.pallas_call(
            _jbf_shared_kernel,
            out_shape=jax.ShapeDtypeStruct((BC, Do, H, W), jnp.float32),
            grid_spec=pltpu.PrefetchScalarGridSpec(
                num_scalar_prefetch=0,
                grid=(BC, Do),
                in_specs=[
                    pl.BlockSpec((n_taps, 1), lambda i, j: (0, 0)),          # weights
                    pl.BlockSpec((1, D, Hp, Wp), lambda i, j: (i, 0, 0, 0)),  # x (resident over j)
                ],
                out_specs=pl.BlockSpec((1, 1, H, W), lambda i, j: (i, j, 0, 0)),
            ),
            compiler_params=pltpu.CompilerParams(
                dimension_semantics=("parallel", "arbitrary"),
                vmem_limit_bytes=_maybe_vmem_limit(est)),
        )(wn, xpad)
        return out.reshape(mat_size)

    # -------- per-site guide: guide streamed directly from HBM (f32) --------
    G = guide_im.reshape(Mg, s ** 3)                      # free view, no copy
    if G.dtype != jnp.float32:
        G = G.astype(jnp.float32)

    # 3x3x3 patches of x in bf16 (halves the unfold bytes).  Still materialized.
    # TODO(synk): build the taps in-kernel from a halo'd resident x block here
    # too (saves ~100 B/site more, ~15-30% of this path's HBM bytes).
    xb = x.astype(jnp.bfloat16)
    xpad = jnp.pad(xb, ((0, 0), (0, 0), (0, 0), (pad, pad), (pad, pad)))
    patches = jnp.stack(
        [xpad[:, :, kd:kd + Do, kh:kh + H, kw:kw + W]
         for kd in range(BIL) for kh in range(BIL) for kw in range(BIL)],
        axis=-1)                                          # (B,C,Do,H,W,27) bf16
    Xp = patches.reshape(K, n_taps)

    TM = _pick_tm(K)
    nt = pl.cdiv(K, TM)                                   # ragged tail: partial block
    # double-buffered VMEM estimate (27/125 lanes pad to 128 in VMEM)
    est = TM * 2 * 128 * (4 + 2 + 4)

    out = pl.pallas_call(
        _jbf_kernel,
        out_shape=jax.ShapeDtypeStruct((K, 1), jnp.float32),
        grid_spec=pltpu.PrefetchScalarGridSpec(
            num_scalar_prefetch=0,
            grid=(nt,),
            in_specs=[
                pl.BlockSpec((TM, s ** 3), lambda i: (i, 0)),       # guide rows, f32
                pl.BlockSpec((TM, n_taps), lambda i: (i, 0)),       # x patches, bf16
                pl.BlockSpec((s ** 3, n_taps), lambda i: (0, 0)),   # Wr*dk, f32, resident
                pl.BlockSpec((1, n_taps), lambda i: (0, 0)),        # bias*dk, f32
            ],
            out_specs=pl.BlockSpec((TM, 1), lambda i: (i, 0)),
        ),
        compiler_params=pltpu.CompilerParams(
            dimension_semantics=("parallel",),
            vmem_limit_bytes=_maybe_vmem_limit(est)),
    )(G, Xp, Wrp, b_dk)
    return out.reshape(mat_size)


# ------------------------- pure-JAX reference --------------------------------

def jbf_block_reference(x, domain_neighbor, guide_im, params):
    """Pure-JAX reference mirroring the PyTorch forward (n_layers=1)."""
    def conv3d(v, w, b):
        return lax.conv_general_dilated(
            v, w.reshape(1, 1, 3, 3, 3), window_strides=(1, 1, 1), padding="VALID",
            dimension_numbers=("NCDHW", "OIDHW", "NCDHW")) + b

    (wr_w, wr_b), = params["range"]
    (wd_w, wd_b), = params["domain"]
    rk = jax.nn.relu(conv3d(guide_im, wr_w, wr_b))
    dk = jax.nn.relu(conv3d(domain_neighbor, wd_w, wd_b))
    weights = dk * rk + 1e-10

    B, C, D, H, W = x.shape
    Do = D - 2 * N_LAYERS
    pad = BIL // 2
    xp = jnp.pad(x, ((0, 0), (0, 0), (0, 0), (pad, pad), (pad, pad)))
    patches = jnp.stack(
        [xp[:, :, kd:kd + Do, kh:kh + H, kw:kw + W]
         for kd in range(BIL) for kh in range(BIL) for kw in range(BIL)],
        axis=-1).reshape(-1, 1, BIL, BIL, BIL)
    wx = weights * patches
    filt = wx.reshape(wx.shape[0], 1, -1).sum(2) / \
        jnp.broadcast_to(weights, patches.shape).reshape(patches.shape[0], 1, -1).sum(2)
    return filt.reshape(B, C, Do, H, W)


if __name__ == "__main__":
    key = jax.random.PRNGKey(0)
    kx, kg, k1, k2 = jax.random.split(key, 4)

    B, C, D, H, W = 2, 1, 6, 8, 8     # x: (N, C, D, H, W)
    S = 5                              # neighborhood size; S - 2*n_layers == 3
    Do = D - 2 * N_LAYERS
    K = B * C * Do * H * W             # number of filter sites / guide patches

    x = jax.random.normal(kx, (B, C, D, H, W), jnp.float32)
    guide_im = jax.random.uniform(kg, (K, 1, S, S, S), dtype=jnp.float32)

    coords = jnp.arange(S, dtype=jnp.float32) - (S - 1) / 2.0
    dz, dy, dxx = jnp.meshgrid(coords, coords, coords, indexing="ij")
    domain_neighbor = jnp.exp(-(dz ** 2 + dy ** 2 + dxx ** 2) / 4.0
                              ).reshape(1, 1, S, S, S).astype(jnp.float32)

    # deterministic synthetic Conv3d(1,1,3,3,3) parameters for each branch
    params = {
        "range": [(jax.random.uniform(k1, (3, 3, 3), jnp.float32, 0.05, 0.2),
                   jnp.float32(0.1))],
        "domain": [(jax.random.uniform(k2, (3, 3, 3), jnp.float32, 0.05, 0.2),
                    jnp.float32(0.1))],
    }

    # --- per-patch guide (Mg == K): f32 guide-streaming matmul kernel ---
    out = jax.block_until_ready(jbf_block_forward(x, domain_neighbor, guide_im, params))
    ref = jax.block_until_ready(jbf_block_reference(x, domain_neighbor, guide_im, params))
    assert out.shape == (B, C, Do, H, W), out.shape
    assert bool(jnp.all(jnp.isfinite(out)))
    # tolerance accounts for bf16 streaming of the unfolded x patches
    assert bool(jnp.allclose(out, ref, rtol=1e-2, atol=5e-3)), \
        float(jnp.max(jnp.abs(out - ref)))

    # --- shared guide (Mg == 1): resident-x spatial-conv fast path ---
    guide_shared = guide_im[:1]
    out_s = jax.block_until_ready(
        jbf_block_forward(x, domain_neighbor, guide_shared, params))
    ref_s = jax.block_until_ready(
        jbf_block_reference(x, domain_neighbor, guide_shared, params))
    assert out_s.shape == (B, C, Do, H, W), out_s.shape
    assert bool(jnp.all(jnp.isfinite(out_s)))
    assert bool(jnp.allclose(out_s, ref_s, rtol=1e-2, atol=5e-3)), \
        float(jnp.max(jnp.abs(out_s - ref_s)))

    print("KERNEL_OK")
</pallas_src>

<mosaic_0001>
module attributes {stable_mosaic.version = 11 : i64} {
  func.func @_jbf_kernel(%arg0: i32, %arg1: memref<512x125xf32, #tpu.memory_space<vmem>>, %arg2: memref<512x27xbf16, #tpu.memory_space<vmem>>, %arg3: memref<125x27xf32, #tpu.memory_space<vmem>>, %arg4: memref<1x27xf32, #tpu.memory_space<vmem>>, %arg5: memref<512x1xf32, #tpu.memory_space<vmem>>) attributes {dimension_semantics = [#tpu.dimension_semantics<parallel>], iteration_bounds = array<i64: 1>, scalar_prefetch = 0 : i64, scratch_operands = 0 : i64, tpu.core_type = #tpu.core_type<tc>, window_params = [{transform_indices = @transform_0, window_bounds = array<i64: 512, 125>}, {transform_indices = @transform_1, window_bounds = array<i64: 512, 27>}, {pipeline_mode = #tpu.pipeline_mode<synchronous>, transform_indices = @transform_2, window_bounds = array<i64: 125, 27>}, {pipeline_mode = #tpu.pipeline_mode<synchronous>, transform_indices = @transform_3, window_bounds = array<i64: 1, 27>}, {transform_indices = @transform_4, window_bounds = array<i64: 512, 1>}]} {
    %c0 = arith.constant 0 : index
    %c0_0 = arith.constant 0 : index
    %0 = vector.load %arg1[%c0, %c0_0] : memref<512x125xf32, #tpu.memory_space<vmem>>, vector<512x125xf32>
    %c0_1 = arith.constant 0 : index
    %c0_2 = arith.constant 0 : index
    %1 = vector.load %arg3[%c0_1, %c0_2] : memref<125x27xf32, #tpu.memory_space<vmem>>, vector<125x27xf32>
    %cst = arith.constant dense<0.000000e+00> : vector<512x27xf32>
    %2 = tpu.matmul %0, %1, %cst {dimension_numbers = #tpu.dot_dimension_numbers<[1], [0], [0], [1], [0, 0, 1, 1], [], []>} : vector<512x125xf32>, vector<125x27xf32>, vector<512x27xf32> -> vector<512x27xf32>
    %c0_3 = arith.constant 0 : index
    %c0_4 = arith.constant 0 : index
    %3 = vector.load %arg4[%c0_3, %c0_4] : memref<1x27xf32, #tpu.memory_space<vmem>>, vector<1x27xf32>
    %4 = vector.broadcast %3 : vector<1x27xf32> to vector<512x27xf32>
    %5 = arith.addf %2, %4 : vector<512x27xf32>
    %cst_5 = arith.constant 0.000000e+00 : f32
    %6 = vector.broadcast %cst_5 : f32 to vector<512x27xf32>
    %7 = arith.maximumf %5, %6 : vector<512x27xf32>
    %cst_6 = arith.constant 1.000000e-10 : f32
    %8 = vector.broadcast %cst_6 : f32 to vector<512x27xf32>
    %9 = arith.addf %7, %8 : vector<512x27xf32>
    %c0_7 = arith.constant 0 : index
    %c0_8 = arith.constant 0 : index
    %10 = vector.load %arg2[%c0_7, %c0_8] : memref<512x27xbf16, #tpu.memory_space<vmem>>, vector<512x27xbf16>
    %11 = arith.extf %10 : vector<512x27xbf16> to vector<512x27xf32>
    %12 = arith.mulf %9, %11 : vector<512x27xf32>
    %cst_9 = arith.constant dense<0.000000e+00> : vector<512xf32>
    %13 = vector.multi_reduction <add>, %12, %cst_9 [1] : vector<512x27xf32> to vector<512xf32>
    %14 = vector.shape_cast %13 : vector<512xf32> to vector<512x1xf32>
    %cst_10 = arith.constant dense<0.000000e+00> : vector<512xf32>
    %15 = vector.multi_reduction <add>, %9, %cst_10 [1] : vector<512x27xf32> to vector<512xf32>
    %16 = vector.shape_cast %15 : vector<512xf32> to vector<512x1xf32>
    %17 = tpu.reciprocal %16 {approx = true} : vector<512x1xf32> -> vector<512x1xf32>
    %18 = arith.mulf %14, %17 : vector<512x1xf32>
    %c0_11 = arith.constant 0 : index
    %c0_12 = arith.constant 0 : index
    %19 = vector.load %arg5[%c0_11, %c0_12] : memref<512x1xf32, #tpu.memory_space<vmem>>, vector<512x1xf32>
    tpu.vector_store %arg5[%c0_11, %c0_12], %18 {strides = array<i32>} : memref<512x1xf32, #tpu.memory_space<vmem>>, vector<512x1xf32>,
    return
  }
  func.func @transform_0(%arg0: i32) -> (i32, i32) {
    %c0_i32 = arith.constant 0 : i32
    %c0_i32_0 = arith.constant 0 : i32
    return %arg0, %c0_i32 : i32, i32
  }
  func.func @transform_1(%arg0: i32) -> (i32, i32) {
    %c0_i32 = arith.constant 0 : i32
    %c0_i32_0 = arith.constant 0 : i32
    return %arg0, %c0_i32 : i32, i32
  }
  func.func @transform_2(%arg0: i32) -> (i32, i32) {
    %c0_i32 = arith.constant 0 : i32
    %c0_i32_0 = arith.constant 0 : i32
    %c0_i32_1 = arith.constant 0 : i32
    return %c0_i32, %c0_i32_0 : i32, i32
  }
  func.func @transform_3(%arg0: i32) -> (i32, i32) {
    %c0_i32 = arith.constant 0 : i32
    %c0_i32_0 = arith.constant 0 : i32
    %c0_i32_1 = arith.constant 0 : i32
    return %c0_i32, %c0_i32_0 : i32, i32
  }
  func.func @transform_4(%arg0: i32) -> (i32, i32) {
    %c0_i32 = arith.constant 0 : i32
    %c0_i32_0 = arith.constant 0 : i32
    return %arg0, %c0_i32 : i32, i32
  }
}

</mosaic_0001>

<llo_original>
// kernel: tpu_custom_call.1
$region0: #{tpu_custom_call.1}
  #allocation0 [shape = 'u32[]', space=smem, size = 0x4, offset = 0x4, fixed_abs, tag = 'smem constant byte address 0x4 - core index']
  #allocation1 [shape = 'u32[72,128]{1,0:T(1,128)}', space=vmem, size = 0x9000, scoped, tag = 'internal scratch']
  %s0 = inlined_call_operand.hbm [shape: f32[512,125], index: 0, kind: input, shape index: {}]
  %s1 = inlined_call_operand.vmem [shape: bf16[512,27], index: 1, kind: input, shape index: {}]
  %s2 = inlined_call_operand.vmem [shape: f32[125,27], index: 2, kind: input, shape index: {}]
  %s3 = inlined_call_operand.vmem [shape: f32[1,27], index: 3, kind: input, shape index: {}]
  %s4 = inlined_call_operand.vmem [shape: f32[512,1], index: 4, kind: output, shape index: {}]
  %s5 = sld [smem:[#allocation0]]
  $region30: #{tpu_custom_call.1} parent=0
    _
  %s7 = ssub.s32 1, %s5
  %s8 = scalar_select 0, %s7, %s5
  $region1: #{tpu_custom_call.1} parent=0
    #allocation2 [shape = 'u8[262144]{0}', space=vmem, size = 0x40000, scoped, tag = 'input window, operand 0, single buffered']
    #allocation3 [shape = 's32[1]{0}', space=sflag, size = 0x4, scoped, tag = 'scoped memory for tpu_custom_call.1']
    %9 = vsyncpa [#allocation3], 0
    // Predicated region
    $region2: #{tpu_custom_call.1} parent=1 // pred_check
      _
    $region3: #{tpu_custom_call.1} parent=1 // pred_check_branch
      %11 = sbr.rel (0) target = $region5
    $region4: #{tpu_custom_call.1} parent=1 // pred_region
      %13 = vsyncadd [#allocation3], 0
      %s14 = sshll.u32 %s0, 4
      %s15 = int_to_ptr.hbm [resolvable:$true] %s14
      %s16 = sshll.u32 [#allocation2], 4
      %s17 = int_to_ptr.vmem [resolvable:$true] %s16
      %22 = dma.hbm_to_vmem [thread:$0]  %s15, 8192, %s17, [#allocation3], 128, 128, 8
    $region5: #{tpu_custom_call.1} parent=1 // pred_fallthru
      _
    // Predicated region
    $region6: #{tpu_custom_call.1} parent=1 // pred_check
      _
    $region7: #{tpu_custom_call.1} parent=1 // pred_check_branch
      %24 = sbr.rel (0) target = $region9
    $region8: #{tpu_custom_call.1} parent=1 // pred_region
      _
    $region9: #{tpu_custom_call.1} parent=1 // pred_fallthru
      _
    // Predicated region
    $region10: #{tpu_custom_call.1} parent=1 // pred_check
      _
    $region11: #{tpu_custom_call.1} parent=1 // pred_check_branch
      %26 = sbr.rel (0) target = $region13
    $region12: #{tpu_custom_call.1} parent=1 // pred_region
      _
    $region13: #{tpu_custom_call.1} parent=1 // pred_fallthru
      _
    // Predicated region
    $region14: #{tpu_custom_call.1} parent=1 // pred_check
      _
    $region15: #{tpu_custom_call.1} parent=1 // pred_check_branch
      %28 = sbr.rel (0) target = $region17
    $region16: #{tpu_custom_call.1} parent=1 // pred_region
      _
    $region17: #{tpu_custom_call.1} parent=1 // pred_fallthru
      _
    // Predicated region
    $region18: #{tpu_custom_call.1} parent=1 // pred_check
      _
    $region19: #{tpu_custom_call.1} parent=1 // pred_check_branch
      %30 = sbr.rel (0) target = $region21
    $region20: #{tpu_custom_call.1} parent=1 // pred_region
      %32 = dma.done [#allocation3], 8192
    $region21: #{tpu_custom_call.1} parent=1 // pred_fallthru
      _
    %v33 = vld [vmem:[#allocation2] sm:$0xff]
    %v34 = vld [vmem:[#allocation2 + $0x8] sm:$0xff]
    %v35 = vld [vmem:[#allocation2 + $0x10] sm:$0xff]
    %v36 = vld [vmem:[#allocation2 + $0x18] sm:$0xff]
    %v37 = vld [vmem:[#allocation2 + $0x20] sm:$0xff]
    %v38 = vld [vmem:[#allocation2 + $0x28] sm:$0xff]
    %v39 = vld [vmem:[#allocation2 + $0x30] sm:$0xff]
    %v40 = vld [vmem:[#allocation2 + $0x38] sm:$0xff]
    %v41 = vld [vmem:[#allocation2 + $0x40] sm:$0xff]
    %v42 = vld [vmem:[#allocation2 + $0x48] sm:$0xff]
    %v43 = vld [vmem:[#allocation2 + $0x50] sm:$0xff]
    %v44 = vld [vmem:[#allocation2 + $0x58] sm:$0xff]
    %v45 = vld [vmem:[#allocation2 + $0x60] sm:$0xff]
    %v46 = vld [vmem:[#allocation2 + $0x68] sm:$0xff]
    %v47 = vld [vmem:[#allocation2 + $0x70] sm:$0xff]
    %v48 = vld [vmem:[#allocation2 + $0x78] sm:$0xff]
    %v49 = vld [vmem:[#allocation2 + $0x80] sm:$0xff]
    %v50 = vld [vmem:[#allocation2 + $0x88] sm:$0xff]
    %v51 = vld [vmem:[#allocation2 + $0x90] sm:$0xff]
    %v52 = vld [vmem:[#allocation2 + $0x98] sm:$0xff]
    %v53 = vld [vmem:[#allocation2 + $0xa0] sm:$0xff]
    %v54 = vld [vmem:[#allocation2 + $0xa8] sm:$0xff]
    %v55 = vld [vmem:[#allocation2 + $0xb0] sm:$0xff]
    %v56 = vld [vmem:[#allocation2 + $0xb8] sm:$0xff]
    %v57 = vld [vmem:[#allocation2 + $0xc0] sm:$0xff]
    %v58 = vld [vmem:[#allocation2 + $0xc8] sm:$0xff]
    %v59 = vld [vmem:[#allocation2 + $0xd0] sm:$0xff]
    %v60 = vld [vmem:[#allocation2 + $0xd8] sm:$0xff]
    %v61 = vld [vmem:[#allocation2 + $0xe0] sm:$0xff]
    %v62 = vld [vmem:[#allocation2 + $0xe8] sm:$0xff]
    %v63 = vld [vmem:[#allocation2 + $0xf0] sm:$0xff]
    %v64 = vld [vmem:[#allocation2 + $0xf8] sm:$0xff]
    %v65 = vld [vmem:[#allocation2 + $0x100] sm:$0xff]
    %v66 = vld [vmem:[#allocation2 + $0x108] sm:$0xff]
    %v67 = vld [vmem:[#allocation2 + $0x110] sm:$0xff]
    %v68 = vld [vmem:[#allocation2 + $0x118] sm:$0xff]
    %v69 = vld [vmem:[#allocation2 + $0x120] sm:$0xff]
    %v70 = vld [vmem:[#allocation2 + $0x128] sm:$0xff]
    %v71 = vld [vmem:[#allocation2 + $0x130] sm:$0xff]
    %v72 = vld [vmem:[#allocation2 + $0x138] sm:$0xff]
    %v73 = vld [vmem:[#allocation2 + $0x140] sm:$0xff]
    %v74 = vld [vmem:[#allocation2 + $0x148] sm:$0xff]
    %v75 = vld [vmem:[#allocation2 + $0x150] sm:$0xff]
    %v76 = vld [vmem:[#allocation2 + $0x158] sm:$0xff]
    %v77 = vld [vmem:[#allocation2 + $0x160] sm:$0xff]
    %v78 = vld [vmem:[#allocation2 + $0x168] sm:$0xff]
    %v79 = vld [vmem:[#allocation2 + $0x170] sm:$0xff]
    %v80 = vld [vmem:[#allocation2 + $0x178] sm:$0xff]
    %v81 = vld [vmem:[#allocation2 + $0x180] sm:$0xff]
    %v82 = vld [vmem:[#allocation2 + $0x188] sm:$0xff]
    %v83 = vld [vmem:[#allocation2 + $0x190] sm:$0xff]
    %v84 = vld [vmem:[#allocation2 + $0x198] sm:$0xff]
    %v85 = vld [vmem:[#allocation2 + $0x1a0] sm:$0xff]
    %v86 = vld [vmem:[#allocation2 + $0x1a8] sm:$0xff]
    %v87 = vld [vmem:[#allocation2 + $0x1b0] sm:$0xff]
    %v88 = vld [vmem:[#allocation2 + $0x1b8] sm:$0xff]
    %v89 = vld [vmem:[#allocation2 + $0x1c0] sm:$0xff]
    %v90 = vld [vmem:[#allocation2 + $0x1c8] sm:$0xff]
    %v91 = vld [vmem:[#allocation2 + $0x1d0] sm:$0xff]
    %v92 = vld [vmem:[#allocation2 + $0x1d8] sm:$0xff]
    %v93 = vld [vmem:[#allocation2 + $0x1e0] sm:$0xff]
    %v94 = vld [vmem:[#allocation2 + $0x1e8] sm:$0xff]
    %v95 = vld [vmem:[#allocation2 + $0x1f0] sm:$0xff]
    %v96 = vld [vmem:[#allocation2 + $0x1f8] sm:$0xff]
    %v97 = vld [vmem:[%s2] sm:$0xff]
    %v98 = vld [vmem:[%s2 + $0x8] sm:$0xff]
    %v99 = vld [vmem:[%s2 + $0x10] sm:$0xff]
    %v100 = vld [vmem:[%s2 + $0x18] sm:$0xff]
    %v101 = vld [vmem:[%s2 + $0x20] sm:$0xff]
    %v102 = vld [vmem:[%s2 + $0x28] sm:$0xff]
    %v103 = vld [vmem:[%s2 + $0x30] sm:$0xff]
    %v104 = vld [vmem:[%s2 + $0x38] sm:$0xff]
    %v105 = vld [vmem:[%s2 + $0x40] sm:$0xff]
    %v106 = vld [vmem:[%s2 + $0x48] sm:$0xff]
    %v107 = vld [vmem:[%s2 + $0x50] sm:$0xff]
    %v108 = vld [vmem:[%s2 + $0x58] sm:$0xff]
    %v109 = vld [vmem:[%s2 + $0x60] sm:$0xff]
    %v110 = vld [vmem:[%s2 + $0x68] sm:$0xff]
    %v111 = vld [vmem:[%s2 + $0x70] sm:$0xff]
    %v112 = vld [vmem:[%s2 + $0x78] sm:$0x1f]
    %v113 = vld [vmem:[%s3] sm:$0x1]
    %v115 = vperm.slane %v113, 0
    %vm117 = vcmask 1022976
    %v119 = vsel %vm117, %v33, 0
    %v122 = vsel %vm117, %v34, 0
    %v125 = vsel %vm117, %v35, 0
    %v128 = vsel %vm117, %v36, 0
    %v131 = vsel %vm117, %v37, 0
    %v134 = vsel %vm117, %v38, 0
    %v137 = vsel %vm117, %v39, 0
    %v140 = vsel %vm117, %v40, 0
    %v143 = vsel %vm117, %v41, 0
    %v146 = vsel %vm117, %v42, 0
    %v149 = vsel %vm117, %v43, 0
    %v152 = vsel %vm117, %v44, 0
    %v155 = vsel %vm117, %v45, 0
    %v158 = vsel %vm117, %v46, 0
    %v161 = vsel %vm117, %v47, 0
    %v164 = vsel %vm117, %v48, 0
    %v167 = vsel %vm117, %v49, 0
    %v170 = vsel %vm117, %v50, 0
    %v173 = vsel %vm117, %v51, 0
    %v176 = vsel %vm117, %v52, 0
    %v179 = vsel %vm117, %v53, 0
    %v182 = vsel %vm117, %v54, 0
    %v185 = vsel %vm117, %v55, 0
    %v188 = vsel %vm117, %v56, 0
    %v191 = vsel %vm117, %v57, 0
    %v194 = vsel %vm117, %v58, 0
    %v197 = vsel %vm117, %v59, 0
    %v200 = vsel %vm117, %v60, 0
    %v203 = vsel %vm117, %v61, 0
    %v206 = vsel %vm117, %v62, 0
    %v209 = vsel %vm117, %v63, 0
    %v212 = vsel %vm117, %v64, 0
    %v215 = vsel %vm117, %v65, 0
    %v218 = vsel %vm117, %v66, 0
    %v221 = vsel %vm117, %v67, 0
    %v224 = vsel %vm117, %v68, 0
    %v227 = vsel %vm117, %v69, 0
    %v230 = vsel %vm117, %v70, 0
    %v233 = vsel %vm117, %v71, 0
    %v236 = vsel %vm117, %v72, 0
    %v239 = vsel %vm117, %v73, 0
    %v242 = vsel %vm117, %v74, 0
    %v245 = vsel %vm117, %v75, 0
    %v248 = vsel %vm117, %v76, 0
    %v251 = vsel %vm117, %v77, 0
    %v254 = vsel %vm117, %v78, 0
    %v257 = vsel %vm117, %v79, 0
    %v260 = vsel %vm117, %v80, 0
    %v263 = vsel %vm117, %v81, 0
    %v266 = vsel %vm117, %v82, 0
    %v269 = vsel %vm117, %v83, 0
    %v272 = vsel %vm117, %v84, 0
    %v275 = vsel %vm117, %v85, 0
    %v278 = vsel %vm117, %v86, 0
    %v281 = vsel %vm117, %v87, 0
    %v284 = vsel %vm117, %v88, 0
    %v287 = vsel %vm117, %v89, 0
    %v290 = vsel %vm117, %v90, 0
    %v293 = vsel %vm117, %v91, 0
    %v296 = vsel %vm117, %v92, 0
    %v299 = vsel %vm117, %v93, 0
    %v302 = vsel %vm117, %v94, 0
    %v305 = vsel %vm117, %v95, 0
    %v308 = vsel %vm117, %v96, 0
    %vm310 = vcmask 1044480
    %v312 = vsel %vm310, %v112, 0
    %314 = vmatpush.msra.mxu0 %v312
    %315 = vmatpush.msra.mxu0 %v111
    %316 = vmatpush.msra.mxu0 %v110
    %317 = vmatpush.msra.mxu0 %v109
    %318 = vmatpush.msra.mxu0 %v108
    %319 = vmatpush.msra.mxu0 %v107
    %320 = vmatpush.msra.mxu0 %v106
    %321 = vmatpush.msra.mxu0 %v105
    %322 = vmatpush.msra.mxu0 %v104
    %323 = vmatpush.msra.mxu0 %v103
    %324 = vmatpush.msra.mxu0 %v102
    %325 = vmatpush.msra.mxu0 %v101
    %326 = vmatpush.msra.mxu0 %v100
    %327 = vmatpush.msra.mxu0 %v99
    %328 = vmatpush.msra.mxu0 %v98
    %329 = vmatpush.msra.mxu0 %v97
    %330 = vmatmul.f32.gmra.mxu0 %v119
    %v331 = vpop.f32.mrf.mxu0
    %v332 = vadd.f32 %v115, %v331
    %333 = vmatmul.f32.gmra.mxu0 %v122
    %v334 = vpop.f32.mrf.mxu0
    %v335 = vadd.f32 %v115, %v334
    %336 = vmatmul.f32.gmra.mxu0 %v125
    %v337 = vpop.f32.mrf.mxu0
    %v338 = vadd.f32 %v115, %v337
    %339 = vmatmul.f32.gmra.mxu0 %v128
    %v340 = vpop.f32.mrf.mxu0
    %v341 = vadd.f32 %v115, %v340
    %342 = vmatmul.f32.gmra.mxu0 %v131
    %v343 = vpop.f32.mrf.mxu0
    %v344 = vadd.f32 %v115, %v343
    %345 = vmatmul.f32.gmra.mxu0 %v134
    %v346 = vpop.f32.mrf.mxu0
    %v347 = vadd.f32 %v115, %v346
    %348 = vmatmul.f32.gmra.mxu0 %v137
    %v349 = vpop.f32.mrf.mxu0
    %v350 = vadd.f32 %v115, %v349
    %351 = vmatmul.f32.gmra.mxu0 %v140
    %v352 = vpop.f32.mrf.mxu0
    %v353 = vadd.f32 %v115, %v352
    %354 = vmatmul.f32.gmra.mxu0 %v143
    %v355 = vpop.f32.mrf.mxu0
    %v356 = vadd.f32 %v115, %v355
    %357 = vmatmul.f32.gmra.mxu0 %v146
    %v358 = vpop.f32.mrf.mxu0
    %v359 = vadd.f32 %v115, %v358
    %360 = vmatmul.f32.gmra.mxu0 %v149
    %v361 = vpop.f32.mrf.mxu0
    %v362 = vadd.f32 %v115, %v361
    %363 = vmatmul.f32.gmra.mxu0 %v152
    %v364 = vpop.f32.mrf.mxu0
    %v365 = vadd.f32 %v115, %v364
    %366 = vmatmul.f32.gmra.mxu0 %v155
    %v367 = vpop.f32.mrf.mxu0
    %v368 = vadd.f32 %v115, %v367
    %369 = vmatmul.f32.gmra.mxu0 %v158
    %v370 = vpop.f32.mrf.mxu0
    %v371 = vadd.f32 %v115, %v370
    %372 = vmatmul.f32.gmra.mxu0 %v161
    %v373 = vpop.f32.mrf.mxu0
    %v374 = vadd.f32 %v115, %v373
    %375 = vmatmul.f32.gmra.mxu0 %v164
    %v376 = vpop.f32.mrf.mxu0
    %v377 = vadd.f32 %v115, %v376
    %378 = vmatmul.f32.gmra.mxu0 %v167
    %v379 = vpop.f32.mrf.mxu0
    %v380 = vadd.f32 %v115, %v379
    %381 = vmatmul.f32.gmra.mxu0 %v170
    %v382 = vpop.f32.mrf.mxu0
    %v383 = vadd.f32 %v115, %v382
    %384 = vmatmul.f32.gmra.mxu0 %v173
    %v385 = vpop.f32.mrf.mxu0
    %v386 = vadd.f32 %v115, %v385
    %387 = vmatmul.f32.gmra.mxu0 %v176
    %v388 = vpop.f32.mrf.mxu0
    %v389 = vadd.f32 %v115, %v388
    %390 = vmatmul.f32.gmra.mxu0 %v179
    %v391 = vpop.f32.mrf.mxu0
    %v392 = vadd.f32 %v115, %v391
    %393 = vmatmul.f32.gmra.mxu0 %v182
    %v394 = vpop.f32.mrf.mxu0
    %v395 = vadd.f32 %v115, %v394
    %396 = vmatmul.f32.gmra.mxu0 %v185
    %v397 = vpop.f32.mrf.mxu0
    %v398 = vadd.f32 %v115, %v397
    %399 = vmatmul.f32.gmra.mxu0 %v188
    %v400 = vpop.f32.mrf.mxu0
    %v401 = vadd.f32 %v115, %v400
    %402 = vmatmul.f32.gmra.mxu0 %v191
    %v403 = vpop.f32.mrf.mxu0
    %v404 = vadd.f32 %v115, %v403
    %405 = vmatmul.f32.gmra.mxu0 %v194
    %v406 = vpop.f32.mrf.mxu0
    %v407 = vadd.f32 %v115, %v406
    %408 = vmatmul.f32.gmra.mxu0 %v197
    %v409 = vpop.f32.mrf.mxu0
    %v410 = vadd.f32 %v115, %v409
    %411 = vmatmul.f32.gmra.mxu0 %v200
    %v412 = vpop.f32.mrf.mxu0
    %v413 = vadd.f32 %v115, %v412
    %414 = vmatmul.f32.gmra.mxu0 %v203
    %v415 = vpop.f32.mrf.mxu0
    %v416 = vadd.f32 %v115, %v415
    %417 = vmatmul.f32.gmra.mxu0 %v206
    %v418 = vpop.f32.mrf.mxu0
    %v419 = vadd.f32 %v115, %v418
    %420 = vmatmul.f32.gmra.mxu0 %v209
    %v421 = vpop.f32.mrf.mxu0
    %v422 = vadd.f32 %v115, %v421
    %423 = vmatmul.f32.gmra.mxu0 %v212
    %v424 = vpop.f32.mrf.mxu0
    %v425 = vadd.f32 %v115, %v424
    %426 = vmatmul.f32.gmra.mxu0 %v215
    %v427 = vpop.f32.mrf.mxu0
    %v428 = vadd.f32 %v115, %v427
    %429 = vmatmul.f32.gmra.mxu0 %v218
    %v430 = vpop.f32.mrf.mxu0
    %v431 = vadd.f32 %v115, %v430
    %432 = vmatmul.f32.gmra.mxu0 %v221
    %v433 = vpop.f32.mrf.mxu0
    %v434 = vadd.f32 %v115, %v433
    %435 = vmatmul.f32.gmra.mxu0 %v224
    %v436 = vpop.f32.mrf.mxu0
    %v437 = vadd.f32 %v115, %v436
    %438 = vmatmul.f32.gmra.mxu0 %v227
    %v439 = vpop.f32.mrf.mxu0
    %v440 = vadd.f32 %v115, %v439
    %441 = vmatmul.f32.gmra.mxu0 %v230
    %v442 = vpop.f32.mrf.mxu0
    %v443 = vadd.f32 %v115, %v442
    %444 = vmatmul.f32.gmra.mxu0 %v233
    %v445 = vpop.f32.mrf.mxu0
    %v446 = vadd.f32 %v115, %v445
    %447 = vmatmul.f32.gmra.mxu0 %v236
    %v448 = vpop.f32.mrf.mxu0
    %v449 = vadd.f32 %v115, %v448
    %450 = vmatmul.f32.gmra.mxu0 %v239
    %v451 = vpop.f32.mrf.mxu0
    %v452 = vadd.f32 %v115, %v451
    %453 = vmatmul.f32.gmra.mxu0 %v242
    %v454 = vpop.f32.mrf.mxu0
    %v455 = vadd.f32 %v115, %v454
    %456 = vmatmul.f32.gmra.mxu0 %v245
    %v457 = vpop.f32.mrf.mxu0
    %v458 = vadd.f32 %v115, %v457
    %459 = vmatmul.f32.gmra.mxu0 %v248
    %v460 = vpop.f32.mrf.mxu0
    %v461 = vadd.f32 %v115, %v460
    %462 = vmatmul.f32.gmra.mxu0 %v251
    %v463 = vpop.f32.mrf.mxu0
    %v464 = vadd.f32 %v115, %v463
    %465 = vmatmul.f32.gmra.mxu0 %v254
    %v466 = vpop.f32.mrf.mxu0
    %v467 = vadd.f32 %v115, %v466
    %468 = vmatmul.f32.gmra.mxu0 %v257
    %v469 = vpop.f32.mrf.mxu0
    %v470 = vadd.f32 %v115, %v469
    %471 = vmatmul.f32.gmra.mxu0 %v260
    %v472 = vpop.f32.mrf.mxu0
    %v473 = vadd.f32 %v115, %v472
    %474 = vmatmul.f32.gmra.mxu0 %v263
    %v475 = vpop.f32.mrf.mxu0
    %v476 = vadd.f32 %v115, %v475
    %477 = vmatmul.f32.gmra.mxu0 %v266
    %v478 = vpop.f32.mrf.mxu0
    %v479 = vadd.f32 %v115, %v478
    %480 = vmatmul.f32.gmra.mxu0 %v269
    %v481 = vpop.f32.mrf.mxu0
    %v482 = vadd.f32 %v115, %v481
    %483 = vmatmul.f32.gmra.mxu0 %v272
    %v484 = vpop.f32.mrf.mxu0
    %v485 = vadd.f32 %v115, %v484
    %486 = vmatmul.f32.gmra.mxu0 %v275
    %v487 = vpop.f32.mrf.mxu0
    %v488 = vadd.f32 %v115, %v487
    %489 = vmatmul.f32.gmra.mxu0 %v278
    %v490 = vpop.f32.mrf.mxu0
    %v491 = vadd.f32 %v115, %v490
    %492 = vmatmul.f32.gmra.mxu0 %v281
    %v493 = vpop.f32.mrf.mxu0
    %v494 = vadd.f32 %v115, %v493
    %495 = vmatmul.f32.gmra.mxu0 %v284
    %v496 = vpop.f32.mrf.mxu0
    %v497 = vadd.f32 %v115, %v496
    %498 = vmatmul.f32.gmra.mxu0 %v287
    %v499 = vpop.f32.mrf.mxu0
    %v500 = vadd.f32 %v115, %v499
    %501 = vmatmul.f32.gmra.mxu0 %v290
    %v502 = vpop.f32.mrf.mxu0
    %v503 = vadd.f32 %v115, %v502
    %504 = vmatmul.f32.gmra.mxu0 %v293
    %v505 = vpop.f32.mrf.mxu0
    %v506 = vadd.f32 %v115, %v505
    %507 = vmatmul.f32.gmra.mxu0 %v296
    %v508 = vpop.f32.mrf.mxu0
    %v509 = vadd.f32 %v115, %v508
    %510 = vmatmul.f32.gmra.mxu0 %v299
    %v511 = vpop.f32.mrf.mxu0
    %v512 = vadd.f32 %v115, %v511
    %513 = vmatmul.f32.gmra.mxu0 %v302
    %v514 = vpop.f32.mrf.mxu0
    %v515 = vadd.f32 %v115, %v514
    %516 = vmatmul.f32.gmra.mxu0 %v305
    %v517 = vpop.f32.mrf.mxu0
    %v518 = vadd.f32 %v115, %v517
    %519 = vmatmul.f32.gmra.mxu0 %v308
    %v520 = vpop.f32.mrf.mxu0
    %v521 = vadd.f32 %v115, %v520
    %522 = vdwg.mxu0
    %v523 = vmax.f32 %v332, 0.0
    %v524 = vmax.f32 %v335, 0.0
    %v525 = vmax.f32 %v338, 0.0
    %v526 = vmax.f32 %v341, 0.0
    %v527 = vmax.f32 %v344, 0.0
    %v528 = vmax.f32 %v347, 0.0
    %v529 = vmax.f32 %v350, 0.0
    %v530 = vmax.f32 %v353, 0.0
    %v531 = vmax.f32 %v356, 0.0
    %v532 = vmax.f32 %v359, 0.0
    %v533 = vmax.f32 %v362, 0.0
    %v534 = vmax.f32 %v365, 0.0
    %v535 = vmax.f32 %v368, 0.0
    %v536 = vmax.f32 %v371, 0.0
    %v537 = vmax.f32 %v374, 0.0
    %v538 = vmax.f32 %v377, 0.0
    %v539 = vmax.f32 %v380, 0.0
    %v540 = vmax.f32 %v383, 0.0
    %v541 = vmax.f32 %v386, 0.0
    %v542 = vmax.f32 %v389, 0.0
    %v543 = vmax.f32 %v392, 0.0
    %v544 = vmax.f32 %v395, 0.0
    %v545 = vmax.f32 %v398, 0.0
    %v546 = vmax.f32 %v401, 0.0
    %v547 = vmax.f32 %v404, 0.0
    %v548 = vmax.f32 %v407, 0.0
    %v549 = vmax.f32 %v410, 0.0
    %v550 = vmax.f32 %v413, 0.0
    %v551 = vmax.f32 %v416, 0.0
    %v552 = vmax.f32 %v419, 0.0
    %v553 = vmax.f32 %v422, 0.0
    %v554 = vmax.f32 %v425, 0.0
    %v555 = vmax.f32 %v428, 0.0
    %v556 = vmax.f32 %v431, 0.0
    %v557 = vmax.f32 %v434, 0.0
    %v558 = vmax.f32 %v437, 0.0
    %v559 = vmax.f32 %v440, 0.0
    %v560 = vmax.f32 %v443, 0.0
    %v561 = vmax.f32 %v446, 0.0
    %v562 = vmax.f32 %v449, 0.0
    %v563 = vmax.f32 %v452, 0.0
    %v564 = vmax.f32 %v455, 0.0
    %v565 = vmax.f32 %v458, 0.0
    %v566 = vmax.f32 %v461, 0.0
    %v567 = vmax.f32 %v464, 0.0
    %v568 = vmax.f32 %v467, 0.0
    %v569 = vmax.f32 %v470, 0.0
    %v570 = vmax.f32 %v473, 0.0
    %v571 = vmax.f32 %v476, 0.0
    %v572 = vmax.f32 %v479, 0.0
    %v573 = vmax.f32 %v482, 0.0
    %v574 = vmax.f32 %v485, 0.0
    %v575 = vmax.f32 %v488, 0.0
    %v576 = vmax.f32 %v491, 0.0
    %v577 = vmax.f32 %v494, 0.0
    %v578 = vmax.f32 %v497, 0.0
    %v579 = vmax.f32 %v500, 0.0
    %v580 = vmax.f32 %v503, 0.0
    %v581 = vmax.f32 %v506, 0.0
    %v582 = vmax.f32 %v509, 0.0
    %v583 = vmax.f32 %v512, 0.0
    %v584 = vmax.f32 %v515, 0.0
    %v585 = vmax.f32 %v518, 0.0
    %v586 = vmax.f32 %v521, 0.0
    %v587 = vadd.f32 %v523, 1e-10
    %v588 = vadd.f32 %v524, 1e-10
    %v589 = vadd.f32 %v525, 1e-10
    %v590 = vadd.f32 %v526, 1e-10
    %v591 = vadd.f32 %v527, 1e-10
    %v592 = vadd.f32 %v528, 1e-10
    %v593 = vadd.f32 %v529, 1e-10
    %v594 = vadd.f32 %v530, 1e-10
    %v595 = vadd.f32 %v531, 1e-10
    %v596 = vadd.f32 %v532, 1e-10
    %v597 = vadd.f32 %v533, 1e-10
    %v598 = vadd.f32 %v534, 1e-10
    %v599 = vadd.f32 %v535, 1e-10
    %v600 = vadd.f32 %v536, 1e-10
    %v601 = vadd.f32 %v537, 1e-10
    %v602 = vadd.f32 %v538, 1e-10
    %v603 = vadd.f32 %v539, 1e-10
    %v604 = vadd.f32 %v540, 1e-10
    %v605 = vadd.f32 %v541, 1e-10
    %v606 = vadd.f32 %v542, 1e-10
    %v607 = vadd.f32 %v543, 1e-10
    %v608 = vadd.f32 %v544, 1e-10
    %v609 = vadd.f32 %v545, 1e-10
    %v610 = vadd.f32 %v546, 1e-10
    %v611 = vadd.f32 %v547, 1e-10
    %v612 = vadd.f32 %v548, 1e-10
    %v613 = vadd.f32 %v549, 1e-10
    %v614 = vadd.f32 %v550, 1e-10
    %v615 = vadd.f32 %v551, 1e-10
    %v616 = vadd.f32 %v552, 1e-10
    %v617 = vadd.f32 %v553, 1e-10
    %v618 = vadd.f32 %v554, 1e-10
    %v619 = vadd.f32 %v555, 1e-10
    %v620 = vadd.f32 %v556, 1e-10
    %v621 = vadd.f32 %v557, 1e-10
    %v622 = vadd.f32 %v558, 1e-10
    %v623 = vadd.f32 %v559, 1e-10
    %v624 = vadd.f32 %v560, 1e-10
    %v625 = vadd.f32 %v561, 1e-10
    %v626 = vadd.f32 %v562, 1e-10
    %v627 = vadd.f32 %v563, 1e-10
    %v628 = vadd.f32 %v564, 1e-10
    %v629 = vadd.f32 %v565, 1e-10
    %v630 = vadd.f32 %v566, 1e-10
    %v631 = vadd.f32 %v567, 1e-10
    %v632 = vadd.f32 %v568, 1e-10
    %v633 = vadd.f32 %v569, 1e-10
    %v634 = vadd.f32 %v570, 1e-10
    %v635 = vadd.f32 %v571, 1e-10
    %v636 = vadd.f32 %v572, 1e-10
    %v637 = vadd.f32 %v573, 1e-10
    %v638 = vadd.f32 %v574, 1e-10
    %v639 = vadd.f32 %v575, 1e-10
    %v640 = vadd.f32 %v576, 1e-10
    %v641 = vadd.f32 %v577, 1e-10
    %v642 = vadd.f32 %v578, 1e-10
    %v643 = vadd.f32 %v579, 1e-10
    %v644 = vadd.f32 %v580, 1e-10
    %v645 = vadd.f32 %v581, 1e-10
    %v646 = vadd.f32 %v582, 1e-10
    %v647 = vadd.f32 %v583, 1e-10
    %v648 = vadd.f32 %v584, 1e-10
    %v649 = vadd.f32 %v585, 1e-10
    %v650 = vadd.f32 %v586, 1e-10
    %v651 = vld [vmem:[%s1] sm:$0xf]
    %v652 = vld [vmem:[%s1 + $0x4] sm:$0xf]
    %v653 = vld [vmem:[%s1 + $0x8] sm:$0xf]
    %v654 = vld [vmem:[%s1 + $0xc] sm:$0xf]
    %v655 = vld [vmem:[%s1 + $0x10] sm:$0xf]
    %v656 = vld [vmem:[%s1 + $0x14] sm:$0xf]
    %v657 = vld [vmem:[%s1 + $0x18] sm:$0xf]
    %v658 = vld [vmem:[%s1 + $0x1c] sm:$0xf]
    %v659 = vld [vmem:[%s1 + $0x20] sm:$0xf]
    %v660 = vld [vmem:[%s1 + $0x24] sm:$0xf]
    %v661 = vld [vmem:[%s1 + $0x28] sm:$0xf]
    %v662 = vld [vmem:[%s1 + $0x2c] sm:$0xf]
    %v663 = vld [vmem:[%s1 + $0x30] sm:$0xf]
    %v664 = vld [vmem:[%s1 + $0x34] sm:$0xf]
    %v665 = vld [vmem:[%s1 + $0x38] sm:$0xf]
    %v666 = vld [vmem:[%s1 + $0x3c] sm:$0xf]
    %v667 = vld [vmem:[%s1 + $0x40] sm:$0xf]
    %v668 = vld [vmem:[%s1 + $0x44] sm:$0xf]
    %v669 = vld [vmem:[%s1 + $0x48] sm:$0xf]
    %v670 = vld [vmem:[%s1 + $0x4c] sm:$0xf]
    %v671 = vld [vmem:[%s1 + $0x50] sm:$0xf]
    %v672 = vld [vmem:[%s1 + $0x54] sm:$0xf]
    %v673 = vld [vmem:[%s1 + $0x58] sm:$0xf]
    %v674 = vld [vmem:[%s1 + $0x5c] sm:$0xf]
    %v675 = vld [vmem:[%s1 + $0x60] sm:$0xf]
    %v676 = vld [vmem:[%s1 + $0x64] sm:$0xf]
    %v677 = vld [vmem:[%s1 + $0x68] sm:$0xf]
    %v678 = vld [vmem:[%s1 + $0x6c] sm:$0xf]
    %v679 = vld [vmem:[%s1 + $0x70] sm:$0xf]
    %v680 = vld [vmem:[%s1 + $0x74] sm:$0xf]
    %v681 = vld [vmem:[%s1 + $0x78] sm:$0xf]
    %v682 = vld [vmem:[%s1 + $0x7c] sm:$0xf]
    %v683 = vld [vmem:[%s1 + $0x80] sm:$0xf]
    %v684 = vld [vmem:[%s1 + $0x84] sm:$0xf]
    %v685 = vld [vmem:[%s1 + $0x88] sm:$0xf]
    %v686 = vld [vmem:[%s1 + $0x8c] sm:$0xf]
    %v687 = vld [vmem:[%s1 + $0x90] sm:$0xf]
    %v688 = vld [vmem:[%s1 + $0x94] sm:$0xf]
    %v689 = vld [vmem:[%s1 + $0x98] sm:$0xf]
    %v690 = vld [vmem:[%s1 + $0x9c] sm:$0xf]
    %v691 = vld [vmem:[%s1 + $0xa0] sm:$0xf]
    %v692 = vld [vmem:[%s1 + $0xa4] sm:$0xf]
    %v693 = vld [vmem:[%s1 + $0xa8] sm:$0xf]
    %v694 = vld [vmem:[%s1 + $0xac] sm:$0xf]
    %v695 = vld [vmem:[%s1 + $0xb0] sm:$0xf]
    %v696 = vld [vmem:[%s1 + $0xb4] sm:$0xf]
    %v697 = vld [vmem:[%s1 + $0xb8] sm:$0xf]
    %v698 = vld [vmem:[%s1 + $0xbc] sm:$0xf]
    %v699 = vld [vmem:[%s1 + $0xc0] sm:$0xf]
    %v700 = vld [vmem:[%s1 + $0xc4] sm:$0xf]
    %v701 = vld [vmem:[%s1 + $0xc8] sm:$0xf]
    %v702 = vld [vmem:[%s1 + $0xcc] sm:$0xf]
    %v703 = vld [vmem:[%s1 + $0xd0] sm:$0xf]
    %v704 = vld [vmem:[%s1 + $0xd4] sm:$0xf]
    %v705 = vld [vmem:[%s1 + $0xd8] sm:$0xf]
    %v706 = vld [vmem:[%s1 + $0xdc] sm:$0xf]
    %v707 = vld [vmem:[%s1 + $0xe0] sm:$0xf]
    %v708 = vld [vmem:[%s1 + $0xe4] sm:$0xf]
    %v709 = vld [vmem:[%s1 + $0xe8] sm:$0xf]
    %v710 = vld [vmem:[%s1 + $0xec] sm:$0xf]
    %v711 = vld [vmem:[%s1 + $0xf0] sm:$0xf]
    %v712 = vld [vmem:[%s1 + $0xf4] sm:$0xf]
    %v713 = vld [vmem:[%s1 + $0xf8] sm:$0xf]
    %v714 = vld [vmem:[%s1 + $0xfc] sm:$0xf]
    %v715 = vunpack.c.l.bf16 %v651
    %v716 = vunpack.c.l.bf16 %v652
    %v717 = vunpack.c.l.bf16 %v653
    %v718 = vunpack.c.l.bf16 %v654
    %v719 = vunpack.c.l.bf16 %v655
    %v720 = vunpack.c.l.bf16 %v656
    %v721 = vunpack.c.l.bf16 %v657
    %v722 = vunpack.c.l.bf16 %v658
    %v723 = vunpack.c.l.bf16 %v659
    %v724 = vunpack.c.l.bf16 %v660
    %v725 = vunpack.c.l.bf16 %v661
    %v726 = vunpack.c.l.bf16 %v662
    %v727 = vunpack.c.l.bf16 %v663
    %v728 = vunpack.c.l.bf16 %v664
    %v729 = vunpack.c.l.bf16 %v665
    %v730 = vunpack.c.l.bf16 %v666
    %v731 = vunpack.c.l.bf16 %v667
    %v732 = vunpack.c.l.bf16 %v668
    %v733 = vunpack.c.l.bf16 %v669
    %v734 = vunpack.c.l.bf16 %v670
    %v735 = vunpack.c.l.bf16 %v671
    %v736 = vunpack.c.l.bf16 %v672
    %v737 = vunpack.c.l.bf16 %v673
    %v738 = vunpack.c.l.bf16 %v674
    %v739 = vunpack.c.l.bf16 %v675
    %v740 = vunpack.c.l.bf16 %v676
    %v741 = vunpack.c.l.bf16 %v677
    %v742 = vunpack.c.l.bf16 %v678
    %v743 = vunpack.c.l.bf16 %v679
    %v744 = vunpack.c.l.bf16 %v680
    %v745 = vunpack.c.l.bf16 %v681
    %v746 = vunpack.c.l.bf16 %v682
    %v747 = vunpack.c.l.bf16 %v683
    %v748 = vunpack.c.l.bf16 %v684
    %v749 = vunpack.c.l.bf16 %v685
    %v750 = vunpack.c.l.bf16 %v686
    %v751 = vunpack.c.l.bf16 %v687
    %v752 = vunpack.c.l.bf16 %v688
    %v753 = vunpack.c.l.bf16 %v689
    %v754 = vunpack.c.l.bf16 %v690
    %v755 = vunpack.c.l.bf16 %v691
    %v756 = vunpack.c.l.bf16 %v692
    %v757 = vunpack.c.l.bf16 %v693
    %v758 = vunpack.c.l.bf16 %v694
    %v759 = vunpack.c.l.bf16 %v695
    %v760 = vunpack.c.l.bf16 %v696
    %v761 = vunpack.c.l.bf16 %v697
    %v762 = vunpack.c.l.bf16 %v698
    %v763 = vunpack.c.l.bf16 %v699
    %v764 = vunpack.c.l.bf16 %v700
    %v765 = vunpack.c.l.bf16 %v701
    %v766 = vunpack.c.l.bf16 %v702
    %v767 = vunpack.c.l.bf16 %v703
    %v768 = vunpack.c.l.bf16 %v704
    %v769 = vunpack.c.l.bf16 %v705
    %v770 = vunpack.c.l.bf16 %v706
    %v771 = vunpack.c.l.bf16 %v707
    %v772 = vunpack.c.l.bf16 %v708
    %v773 = vunpack.c.l.bf16 %v709
    %v774 = vunpack.c.l.bf16 %v710
    %v775 = vunpack.c.l.bf16 %v711
    %v776 = vunpack.c.l.bf16 %v712
    %v777 = vunpack.c.l.bf16 %v713
    %v778 = vunpack.c.l.bf16 %v714
    %v779 = vmul.f32 %v587, %v715
    %v780 = vmul.f32 %v588, %v716
    %v781 = vmul.f32 %v589, %v717
    %v782 = vmul.f32 %v590, %v718
    %v783 = vmul.f32 %v591, %v719
    %v784 = vmul.f32 %v592, %v720
    %v785 = vmul.f32 %v593, %v721
    %v786 = vmul.f32 %v594, %v722
    %v787 = vmul.f32 %v595, %v723
    %v788 = vmul.f32 %v596, %v724
    %v789 = vmul.f32 %v597, %v725
    %v790 = vmul.f32 %v598, %v726
    %v791 = vmul.f32 %v599, %v727
    %v792 = vmul.f32 %v600, %v728
    %v793 = vmul.f32 %v601, %v729
    %v794 = vmul.f32 %v602, %v730
    %v795 = vmul.f32 %v603, %v731
    %v796 = vmul.f32 %v604, %v732
    %v797 = vmul.f32 %v605, %v733
    %v798 = vmul.f32 %v606, %v734
    %v799 = vmul.f32 %v607, %v735
    %v800 = vmul.f32 %v608, %v736
    %v801 = vmul.f32 %v609, %v737
    %v802 = vmul.f32 %v610, %v738
    %v803 = vmul.f32 %v611, %v739
    %v804 = vmul.f32 %v612, %v740
    %v805 = vmul.f32 %v613, %v741
    %v806 = vmul.f32 %v614, %v742
    %v807 = vmul.f32 %v615, %v743
    %v808 = vmul.f32 %v616, %v744
    %v809 = vmul.f32 %v617, %v745
    %v810 = vmul.f32 %v618, %v746
    %v811 = vmul.f32 %v619, %v747
    %v812 = vmul.f32 %v620, %v748
    %v813 = vmul.f32 %v621, %v749
    %v814 = vmul.f32 %v622, %v750
    %v815 = vmul.f32 %v623, %v751
    %v816 = vmul.f32 %v624, %v752
    %v817 = vmul.f32 %v625, %v753
    %v818 = vmul.f32 %v626, %v754
    %v819 = vmul.f32 %v627, %v755
    %v820 = vmul.f32 %v628, %v756
    %v821 = vmul.f32 %v629, %v757
    %v822 = vmul.f32 %v630, %v758
    %v823 = vmul.f32 %v631, %v759
    %v824 = vmul.f32 %v632, %v760
    %v825 = vmul.f32 %v633, %v761
    %v826 = vmul.f32 %v634, %v762
    %v827 = vmul.f32 %v635, %v763
    %v828 = vmul.f32 %v636, %v764
    %v829 = vmul.f32 %v637, %v765
    %v830 = vmul.f32 %v638, %v766
    %v831 = vmul.f32 %v639, %v767
    %v832 = vmul.f32 %v640, %v768
    %v833 = vmul.f32 %v641, %v769
    %v834 = vmul.f32 %v642, %v770
    %v835 = vmul.f32 %v643, %v771
    %v836 = vmul.f32 %v644, %v772
    %v837 = vmul.f32 %v645, %v773
    %v838 = vmul.f32 %v646, %v774
    %v839 = vmul.f32 %v647, %v775
    %v840 = vmul.f32 %v648, %v776
    %v841 = vmul.f32 %v649, %v777
    %v842 = vmul.f32 %v650, %v778
    %vm843 = vcmask 220160
    %v844 = vsel %vm843, %v779, 0.0
    %845 = vadd.xlane.f32.xlu0 %v844
    %v846 = vpop.xlane.xlu0 %845
    %v847 = vsel %vm843, %v780, 0.0
    %848 = vadd.xlane.f32.xlu0 %v847
    %v849 = vpop.xlane.xlu0 %848
    %v850 = vsel %vm843, %v781, 0.0
    %851 = vadd.xlane.f32.xlu0 %v850
    %v852 = vpop.xlane.xlu0 %851
    %v853 = vsel %vm843, %v782, 0.0
    %854 = vadd.xlane.f32.xlu0 %v853
    %v855 = vpop.xlane.xlu0 %854
    %v856 = vsel %vm843, %v783, 0.0
    %857 = vadd.xlane.f32.xlu0 %v856
    %v858 = vpop.xlane.xlu0 %857
    %v859 = vsel %vm843, %v784, 0.0
    %860 = vadd.xlane.f32.xlu0 %v859
    %v861 = vpop.xlane.xlu0 %860
    %v862 = vsel %vm843, %v785, 0.0
    %863 = vadd.xlane.f32.xlu0 %v862
    %v864 = vpop.xlane.xlu0 %863
    %v865 = vsel %vm843, %v786, 0.0
    %866 = vadd.xlane.f32.xlu0 %v865
    %v867 = vpop.xlane.xlu0 %866
    %v868 = vsel %vm843, %v787, 0.0
    %869 = vadd.xlane.f32.xlu0 %v868
    %v870 = vpop.xlane.xlu0 %869
    %v871 = vsel %vm843, %v788, 0.0
    %872 = vadd.xlane.f32.xlu0 %v871
    %v873 = vpop.xlane.xlu0 %872
    %v874 = vsel %vm843, %v789, 0.0
    %875 = vadd.xlane.f32.xlu0 %v874
    %v876 = vpop.xlane.xlu0 %875
    %v877 = vsel %vm843, %v790, 0.0
    %878 = vadd.xlane.f32.xlu0 %v877
    %v879 = vpop.xlane.xlu0 %878
    %v880 = vsel %vm843, %v791, 0.0
    %881 = vadd.xlane.f32.xlu0 %v880
    %v882 = vpop.xlane.xlu0 %881
    %v883 = vsel %vm843, %v792, 0.0
    %884 = vadd.xlane.f32.xlu0 %v883
    %v885 = vpop.xlane.xlu0 %884
    %v886 = vsel %vm843, %v793, 0.0
    %887 = vadd.xlane.f32.xlu0 %v886
    %v888 = vpop.xlane.xlu0 %887
    %v889 = vsel %vm843, %v794, 0.0
    %890 = vadd.xlane.f32.xlu0 %v889
    %v891 = vpop.xlane.xlu0 %890
    %v892 = vsel %vm843, %v795, 0.0
    %893 = vadd.xlane.f32.xlu0 %v892
    %v894 = vpop.xlane.xlu0 %893
    %v895 = vsel %vm843, %v796, 0.0
    %896 = vadd.xlane.f32.xlu0 %v895
    %v897 = vpop.xlane.xlu0 %896
    %v898 = vsel %vm843, %v797, 0.0
    %899 = vadd.xlane.f32.xlu0 %v898
    %v900 = vpop.xlane.xlu0 %899
    %v901 = vsel %vm843, %v798, 0.0
    %902 = vadd.xlane.f32.xlu0 %v901
    %v903 = vpop.xlane.xlu0 %902
    %v904 = vsel %vm843, %v799, 0.0
    %905 = vadd.xlane.f32.xlu0 %v904
    %v906 = vpop.xlane.xlu0 %905
    %v907 = vsel %vm843, %v800, 0.0
    %908 = vadd.xlane.f32.xlu0 %v907
    %v909 = vpop.xlane.xlu0 %908
    %v910 = vsel %vm843, %v801, 0.0
    %911 = vadd.xlane.f32.xlu0 %v910
    %v912 = vpop.xlane.xlu0 %911
    %v913 = vsel %vm843, %v802, 0.0
    %914 = vadd.xlane.f32.xlu0 %v913
    %v915 = vpop.xlane.xlu0 %914
    %v916 = vsel %vm843, %v803, 0.0
    %917 = vadd.xlane.f32.xlu0 %v916
    %v918 = vpop.xlane.xlu0 %917
    %v919 = vsel %vm843, %v804, 0.0
    %920 = vadd.xlane.f32.xlu0 %v919
    %v921 = vpop.xlane.xlu0 %920
    %v922 = vsel %vm843, %v805, 0.0
    %923 = vadd.xlane.f32.xlu0 %v922
    %v924 = vpop.xlane.xlu0 %923
    %v925 = vsel %vm843, %v806, 0.0
    %926 = vadd.xlane.f32.xlu0 %v925
    %v927 = vpop.xlane.xlu0 %926
    %v928 = vsel %vm843, %v807, 0.0
    %929 = vadd.xlane.f32.xlu0 %v928
    %v930 = vpop.xlane.xlu0 %929
    %v931 = vsel %vm843, %v808, 0.0
    %932 = vadd.xlane.f32.xlu0 %v931
    %v933 = vpop.xlane.xlu0 %932
    %v934 = vsel %vm843, %v809, 0.0
    %935 = vadd.xlane.f32.xlu0 %v934
    %v936 = vpop.xlane.xlu0 %935
    %v937 = vsel %vm843, %v810, 0.0
    %938 = vadd.xlane.f32.xlu0 %v937
    %v939 = vpop.xlane.xlu0 %938
    %v940 = vsel %vm843, %v811, 0.0
    %941 = vadd.xlane.f32.xlu0 %v940
    %v942 = vpop.xlane.xlu0 %941
    %v943 = vsel %vm843, %v812, 0.0
    %944 = vadd.xlane.f32.xlu0 %v943
    %v945 = vpop.xlane.xlu0 %944
    %v946 = vsel %vm843, %v813, 0.0
    %947 = vadd.xlane.f32.xlu0 %v946
    %v948 = vpop.xlane.xlu0 %947
    %v949 = vsel %vm843, %v814, 0.0
    %950 = vadd.xlane.f32.xlu0 %v949
    %v951 = vpop.xlane.xlu0 %950
    %v952 = vsel %vm843, %v815, 0.0
    %953 = vadd.xlane.f32.xlu0 %v952
    %v954 = vpop.xlane.xlu0 %953
    %v955 = vsel %vm843, %v816, 0.0
    %956 = vadd.xlane.f32.xlu0 %v955
    %v957 = vpop.xlane.xlu0 %956
    %v958 = vsel %vm843, %v817, 0.0
    %959 = vadd.xlane.f32.xlu0 %v958
    %v960 = vpop.xlane.xlu0 %959
    %v961 = vsel %vm843, %v818, 0.0
    %962 = vadd.xlane.f32.xlu0 %v961
    %v963 = vpop.xlane.xlu0 %962
    %v964 = vsel %vm843, %v819, 0.0
    %965 = vadd.xlane.f32.xlu0 %v964
    %v966 = vpop.xlane.xlu0 %965
    %v967 = vsel %vm843, %v820, 0.0
    %968 = vadd.xlane.f32.xlu0 %v967
    %v969 = vpop.xlane.xlu0 %968
    %v970 = vsel %vm843, %v821, 0.0
    %971 = vadd.xlane.f32.xlu0 %v970
    %v972 = vpop.xlane.xlu0 %971
    %v973 = vsel %vm843, %v822, 0.0
    %974 = vadd.xlane.f32.xlu0 %v973
    %v975 = vpop.xlane.xlu0 %974
    %v976 = vsel %vm843, %v823, 0.0
    %977 = vadd.xlane.f32.xlu0 %v976
    %v978 = vpop.xlane.xlu0 %977
    %v979 = vsel %vm843, %v824, 0.0
    %980 = vadd.xlane.f32.xlu0 %v979
    %v981 = vpop.xlane.xlu0 %980
    %v982 = vsel %vm843, %v825, 0.0
    %983 = vadd.xlane.f32.xlu0 %v982
    %v984 = vpop.xlane.xlu0 %983
    %v985 = vsel %vm843, %v826, 0.0
    %986 = vadd.xlane.f32.xlu0 %v985
    %v987 = vpop.xlane.xlu0 %986
    %v988 = vsel %vm843, %v827, 0.0
    %989 = vadd.xlane.f32.xlu0 %v988
    %v990 = vpop.xlane.xlu0 %989
    %v991 = vsel %vm843, %v828, 0.0
    %992 = vadd.xlane.f32.xlu0 %v991
    %v993 = vpop.xlane.xlu0 %992
    %v994 = vsel %vm843, %v829, 0.0
    %995 = vadd.xlane.f32.xlu0 %v994
    %v996 = vpop.xlane.xlu0 %995
    %v997 = vsel %vm843, %v830, 0.0
    %998 = vadd.xlane.f32.xlu0 %v997
    %v999 = vpop.xlane.xlu0 %998
    %v1000 = vsel %vm843, %v831, 0.0
    %1001 = vadd.xlane.f32.xlu0 %v1000
    %v1002 = vpop.xlane.xlu0 %1001
    %v1003 = vsel %vm843, %v832, 0.0
    %1004 = vadd.xlane.f32.xlu0 %v1003
    %v1005 = vpop.xlane.xlu0 %1004
    %v1006 = vsel %vm843, %v833, 0.0
    %1007 = vadd.xlane.f32.xlu0 %v1006
    %v1008 = vpop.xlane.xlu0 %1007
    %v1009 = vsel %vm843, %v834, 0.0
    %1010 = vadd.xlane.f32.xlu0 %v1009
    %v1011 = vpop.xlane.xlu0 %1010
    %v1012 = vsel %vm843, %v835, 0.0
    %1013 = vadd.xlane.f32.xlu0 %v1012
    %v1014 = vpop.xlane.xlu0 %1013
    %v1015 = vsel %vm843, %v836, 0.0
    %1016 = vadd.xlane.f32.xlu0 %v1015
    %v1017 = vpop.xlane.xlu0 %1016
    %v1018 = vsel %vm843, %v837, 0.0
    %1019 = vadd.xlane.f32.xlu0 %v1018
    %v1020 = vpop.xlane.xlu0 %1019
    %v1021 = vsel %vm843, %v838, 0.0
    %1022 = vadd.xlane.f32.xlu0 %v1021
    %v1023 = vpop.xlane.xlu0 %1022
    %v1024 = vsel %vm843, %v839, 0.0
    %1025 = vadd.xlane.f32.xlu0 %v1024
    %v1026 = vpop.xlane.xlu0 %1025
    %v1027 = vsel %vm843, %v840, 0.0
    %1028 = vadd.xlane.f32.xlu0 %v1027
    %v1029 = vpop.xlane.xlu0 %1028
    %v1030 = vsel %vm843, %v841, 0.0
    %1031 = vadd.xlane.f32.xlu0 %v1030
    %v1032 = vpop.xlane.xlu0 %1031
    %v1033 = vsel %vm843, %v842, 0.0
    %1034 = vadd.xlane.f32.xlu0 %v1033
    %v1035 = vpop.xlane.xlu0 %1034
    %v1036 = vsel %vm843, %v587, 0.0
    %1037 = vadd.xlane.f32.xlu0 %v1036
    %v1038 = vpop.xlane.xlu0 %1037
    %v1039 = vsel %vm843, %v588, 0.0
    %1040 = vadd.xlane.f32.xlu0 %v1039
    %v1041 = vpop.xlane.xlu0 %1040
    %v1042 = vsel %vm843, %v589, 0.0
    %1043 = vadd.xlane.f32.xlu0 %v1042
    %v1044 = vpop.xlane.xlu0 %1043
    %v1045 = vsel %vm843, %v590, 0.0
    %1046 = vadd.xlane.f32.xlu0 %v1045
    %v1047 = vpop.xlane.xlu0 %1046
    %v1048 = vsel %vm843, %v591, 0.0
    %1049 = vadd.xlane.f32.xlu0 %v1048
    %v1050 = vpop.xlane.xlu0 %1049
    %v1051 = vsel %vm843, %v592, 0.0
    %1052 = vadd.xlane.f32.xlu0 %v1051
    %v1053 = vpop.xlane.xlu0 %1052
    %v1054 = vsel %vm843, %v593, 0.0
    %1055 = vadd.xlane.f32.xlu0 %v1054
    %v1056 = vpop.xlane.xlu0 %1055
    %v1057 = vsel %vm843, %v594, 0.0
    %1058 = vadd.xlane.f32.xlu0 %v1057
    %v1059 = vpop.xlane.xlu0 %1058
    %v1060 = vsel %vm843, %v595, 0.0
    %1061 = vadd.xlane.f32.xlu0 %v1060
    %v1062 = vpop.xlane.xlu0 %1061
    %v1063 = vsel %vm843, %v596, 0.0
    %1064 = vadd.xlane.f32.xlu0 %v1063
    %v1065 = vpop.xlane.xlu0 %1064
    %v1066 = vsel %vm843, %v597, 0.0
    %1067 = vadd.xlane.f32.xlu0 %v1066
    %v1068 = vpop.xlane.xlu0 %1067
    %v1069 = vsel %vm843, %v598, 0.0
    %1070 = vadd.xlane.f32.xlu0 %v1069
    %v1071 = vpop.xlane.xlu0 %1070
    %v1072 = vsel %vm843, %v599, 0.0
    %1073 = vadd.xlane.f32.xlu0 %v1072
    %v1074 = vpop.xlane.xlu0 %1073
    %v1075 = vsel %vm843, %v600, 0.0
    %1076 = vadd.xlane.f32.xlu0 %v1075
    %v1077 = vpop.xlane.xlu0 %1076
    %v1078 = vsel %vm843, %v601, 0.0
    %1079 = vadd.xlane.f32.xlu0 %v1078
    %v1080 = vpop.xlane.xlu0 %1079
    %v1081 = vsel %vm843, %v602, 0.0
    %1082 = vadd.xlane.f32.xlu0 %v1081
    %v1083 = vpop.xlane.xlu0 %1082
    %v1084 = vsel %vm843, %v603, 0.0
    %1085 = vadd.xlane.f32.xlu0 %v1084
    %v1086 = vpop.xlane.xlu0 %1085
    %v1087 = vsel %vm843, %v604, 0.0
    %1088 = vadd.xlane.f32.xlu0 %v1087
    %v1089 = vpop.xlane.xlu0 %1088
    %v1090 = vsel %vm843, %v605, 0.0
    %1091 = vadd.xlane.f32.xlu0 %v1090
    %v1092 = vpop.xlane.xlu0 %1091
    %v1093 = vsel %vm843, %v606, 0.0
    %1094 = vadd.xlane.f32.xlu0 %v1093
    %v1095 = vpop.xlane.xlu0 %1094
    %v1096 = vsel %vm843, %v607, 0.0
    %1097 = vadd.xlane.f32.xlu0 %v1096
    %v1098 = vpop.xlane.xlu0 %1097
    %v1099 = vsel %vm843, %v608, 0.0
    %1100 = vadd.xlane.f32.xlu0 %v1099
    %v1101 = vpop.xlane.xlu0 %1100
    %v1102 = vsel %vm843, %v609, 0.0
    %1103 = vadd.xlane.f32.xlu0 %v1102
    %v1104 = vpop.xlane.xlu0 %1103
    %v1105 = vsel %vm843, %v610, 0.0
    %1106 = vadd.xlane.f32.xlu0 %v1105
    %v1107 = vpop.xlane.xlu0 %1106
    %v1108 = vsel %vm843, %v611, 0.0
    %1109 = vadd.xlane.f32.xlu0 %v1108
    %v1110 = vpop.xlane.xlu0 %1109
    %v1111 = vsel %vm843, %v612, 0.0
    %1112 = vadd.xlane.f32.xlu0 %v1111
    %v1113 = vpop.xlane.xlu0 %1112
    %v1114 = vsel %vm843, %v613, 0.0
    %1115 = vadd.xlane.f32.xlu0 %v1114
    %v1116 = vpop.xlane.xlu0 %1115
    %v1117 = vsel %vm843, %v614, 0.0
    %1118 = vadd.xlane.f32.xlu0 %v1117
    %v1119 = vpop.xlane.xlu0 %1118
    %v1120 = vsel %vm843, %v615, 0.0
    %1121 = vadd.xlane.f32.xlu0 %v1120
    %v1122 = vpop.xlane.xlu0 %1121
    %v1123 = vsel %vm843, %v616, 0.0
    %1124 = vadd.xlane.f32.xlu0 %v1123
    %v1125 = vpop.xlane.xlu0 %1124
    %v1126 = vsel %vm843, %v617, 0.0
    %1127 = vadd.xlane.f32.xlu0 %v1126
    %v1128 = vpop.xlane.xlu0 %1127
    %v1129 = vsel %vm843, %v618, 0.0
    %1130 = vadd.xlane.f32.xlu0 %v1129
    %v1131 = vpop.xlane.xlu0 %1130
    %v1132 = vsel %vm843, %v619, 0.0
    %1133 = vadd.xlane.f32.xlu0 %v1132
    %v1134 = vpop.xlane.xlu0 %1133
    %v1135 = vsel %vm843, %v620, 0.0
    %1136 = vadd.xlane.f32.xlu0 %v1135
    %v1137 = vpop.xlane.xlu0 %1136
    %v1138 = vsel %vm843, %v621, 0.0
    %1139 = vadd.xlane.f32.xlu0 %v1138
    %v1140 = vpop.xlane.xlu0 %1139
    %v1141 = vsel %vm843, %v622, 0.0
    %1142 = vadd.xlane.f32.xlu0 %v1141
    %v1143 = vpop.xlane.xlu0 %1142
    %v1144 = vsel %vm843, %v623, 0.0
    %1145 = vadd.xlane.f32.xlu0 %v1144
    %v1146 = vpop.xlane.xlu0 %1145
    %v1147 = vsel %vm843, %v624, 0.0
    %1148 = vadd.xlane.f32.xlu0 %v1147
    %v1149 = vpop.xlane.xlu0 %1148
    %v1150 = vsel %vm843, %v625, 0.0
    %1151 = vadd.xlane.f32.xlu0 %v1150
    %v1152 = vpop.xlane.xlu0 %1151
    %v1153 = vsel %vm843, %v626, 0.0
    %1154 = vadd.xlane.f32.xlu0 %v1153
    %v1155 = vpop.xlane.xlu0 %1154
    %v1156 = vsel %vm843, %v627, 0.0
    %1157 = vadd.xlane.f32.xlu0 %v1156
    %v1158 = vpop.xlane.xlu0 %1157
    %v1159 = vsel %vm843, %v628, 0.0
    %1160 = vadd.xlane.f32.xlu0 %v1159
    %v1161 = vpop.xlane.xlu0 %1160
    %v1162 = vsel %vm843, %v629, 0.0
    %1163 = vadd.xlane.f32.xlu0 %v1162
    %v1164 = vpop.xlane.xlu0 %1163
    %v1165 = vsel %vm843, %v630, 0.0
    %1166 = vadd.xlane.f32.xlu0 %v1165
    %v1167 = vpop.xlane.xlu0 %1166
    %v1168 = vsel %vm843, %v631, 0.0
    %1169 = vadd.xlane.f32.xlu0 %v1168
    %v1170 = vpop.xlane.xlu0 %1169
    %v1171 = vsel %vm843, %v632, 0.0
    %1172 = vadd.xlane.f32.xlu0 %v1171
    %v1173 = vpop.xlane.xlu0 %1172
    %v1174 = vsel %vm843, %v633, 0.0
    %1175 = vadd.xlane.f32.xlu0 %v1174
    %v1176 = vpop.xlane.xlu0 %1175
    %v1177 = vsel %vm843, %v634, 0.0
    %1178 = vadd.xlane.f32.xlu0 %v1177
    %v1179 = vpop.xlane.xlu0 %1178
    %v1180 = vsel %vm843, %v635, 0.0
    %1181 = vadd.xlane.f32.xlu0 %v1180
    %v1182 = vpop.xlane.xlu0 %1181
    %v1183 = vsel %vm843, %v636, 0.0
    %1184 = vadd.xlane.f32.xlu0 %v1183
    %v1185 = vpop.xlane.xlu0 %1184
    %v1186 = vsel %vm843, %v637, 0.0
    %1187 = vadd.xlane.f32.xlu0 %v1186
    %v1188 = vpop.xlane.xlu0 %1187
    %v1189 = vsel %vm843, %v638, 0.0
    %1190 = vadd.xlane.f32.xlu0 %v1189
    %v1191 = vpop.xlane.xlu0 %1190
    %v1192 = vsel %vm843, %v639, 0.0
    %1193 = vadd.xlane.f32.xlu0 %v1192
    %v1194 = vpop.xlane.xlu0 %1193
    %v1195 = vsel %vm843, %v640, 0.0
    %1196 = vadd.xlane.f32.xlu0 %v1195
    %v1197 = vpop.xlane.xlu0 %1196
    %v1198 = vsel %vm843, %v641, 0.0
    %1199 = vadd.xlane.f32.xlu0 %v1198
    %v1200 = vpop.xlane.xlu0 %1199
    %v1201 = vsel %vm843, %v642, 0.0
    %1202 = vadd.xlane.f32.xlu0 %v1201
    %v1203 = vpop.xlane.xlu0 %1202
    %v1204 = vsel %vm843, %v643, 0.0
    %1205 = vadd.xlane.f32.xlu0 %v1204
    %v1206 = vpop.xlane.xlu0 %1205
    %v1207 = vsel %vm843, %v644, 0.0
    %1208 = vadd.xlane.f32.xlu0 %v1207
    %v1209 = vpop.xlane.xlu0 %1208
    %v1210 = vsel %vm843, %v645, 0.0
    %1211 = vadd.xlane.f32.xlu0 %v1210
    %v1212 = vpop.xlane.xlu0 %1211
    %v1213 = vsel %vm843, %v646, 0.0
    %1214 = vadd.xlane.f32.xlu0 %v1213
    %v1215 = vpop.xlane.xlu0 %1214
    %v1216 = vsel %vm843, %v647, 0.0
    %1217 = vadd.xlane.f32.xlu0 %v1216
    %v1218 = vpop.xlane.xlu0 %1217
    %v1219 = vsel %vm843, %v648, 0.0
    %1220 = vadd.xlane.f32.xlu0 %v1219
    %v1221 = vpop.xlane.xlu0 %1220
    %v1222 = vsel %vm843, %v649, 0.0
    %1223 = vadd.xlane.f32.xlu0 %v1222
    %v1224 = vpop.xlane.xlu0 %1223
    %v1225 = vsel %vm843, %v650, 0.0
    %1226 = vadd.xlane.f32.xlu0 %v1225
    %v1227 = vpop.xlane.xlu0 %1226
    %v1228 = vrcp.pop %v1038
    %v1229 = vrcp.pop %v1041
    %v1230 = vrcp.pop %v1044
    %v1231 = vrcp.pop %v1047
    %v1232 = vrcp.pop %v1050
    %v1233 = vrcp.pop %v1053
    %v1234 = vrcp.pop %v1056
    %v1235 = vrcp.pop %v1059
    %v1236 = vrcp.pop %v1062
    %v1237 = vrcp.pop %v1065
    %v1238 = vrcp.pop %v1068
    %v1239 = vrcp.pop %v1071
    %v1240 = vrcp.pop %v1074
    %v1241 = vrcp.pop %v1077
    %v1242 = vrcp.pop %v1080
    %v1243 = vrcp.pop %v1083
    %v1244 = vrcp.pop %v1086
    %v1245 = vrcp.pop %v1089
    %v1246 = vrcp.pop %v1092
    %v1247 = vrcp.pop %v1095
    %v1248 = vrcp.pop %v1098
    %v1249 = vrcp.pop %v1101
    %v1250 = vrcp.pop %v1104
    %v1251 = vrcp.pop %v1107
    %v1252 = vrcp.pop %v1110
    %v1253 = vrcp.pop %v1113
    %v1254 = vrcp.pop %v1116
    %v1255 = vrcp.pop %v1119
    %v1256 = vrcp.pop %v1122
    %v1257 = vrcp.pop %v1125
    %v1258 = vrcp.pop %v1128
    %v1259 = vrcp.pop %v1131
    %v1260 = vrcp.pop %v1134
    %v1261 = vrcp.pop %v1137
    %v1262 = vrcp.pop %v1140
    %v1263 = vrcp.pop %v1143
    %v1264 = vrcp.pop %v1146
    %v1265 = vrcp.pop %v1149
    %v1266 = vrcp.pop %v1152
    %v1267 = vrcp.pop %v1155
    %v1268 = vrcp.pop %v1158
    %v1269 = vrcp.pop %v1161
    %v1270 = vrcp.pop %v1164
    %v1271 = vrcp.pop %v1167
    %v1272 = vrcp.pop %v1170
    %v1273 = vrcp.pop %v1173
    %v1274 = vrcp.pop %v1176
    %v1275 = vrcp.pop %v1179
    %v1276 = vrcp.pop %v1182
    %v1277 = vrcp.pop %v1185
    %v1278 = vrcp.pop %v1188
    %v1279 = vrcp.pop %v1191
    %v1280 = vrcp.pop %v1194
    %v1281 = vrcp.pop %v1197
    %v1282 = vrcp.pop %v1200
    %v1283 = vrcp.pop %v1203
    %v1284 = vrcp.pop %v1206
    %v1285 = vrcp.pop %v1209
    %v1286 = vrcp.pop %v1212
    %v1287 = vrcp.pop %v1215
    %v1288 = vrcp.pop %v1218
    %v1289 = vrcp.pop %v1221
    %v1290 = vrcp.pop %v1224
    %v1291 = vrcp.pop %v1227
    %v1292 = vmul.f32 %v846, %v1228
    %v1293 = vmul.f32 %v849, %v1229
    %v1294 = vmul.f32 %v852, %v1230
    %v1295 = vmul.f32 %v855, %v1231
    %v1296 = vmul.f32 %v858, %v1232
    %v1297 = vmul.f32 %v861, %v1233
    %v1298 = vmul.f32 %v864, %v1234
    %v1299 = vmul.f32 %v867, %v1235
    %v1300 = vmul.f32 %v870, %v1236
    %v1301 = vmul.f32 %v873, %v1237
    %v1302 = vmul.f32 %v876, %v1238
    %v1303 = vmul.f32 %v879, %v1239
    %v1304 = vmul.f32 %v882, %v1240
    %v1305 = vmul.f32 %v885, %v1241
    %v1306 = vmul.f32 %v888, %v1242
    %v1307 = vmul.f32 %v891, %v1243
    %v1308 = vmul.f32 %v894, %v1244
    %v1309 = vmul.f32 %v897, %v1245
    %v1310 = vmul.f32 %v900, %v1246
    %v1311 = vmul.f32 %v903, %v1247
    %v1312 = vmul.f32 %v906, %v1248
    %v1313 = vmul.f32 %v909, %v1249
    %v1314 = vmul.f32 %v912, %v1250
    %v1315 = vmul.f32 %v915, %v1251
    %v1316 = vmul.f32 %v918, %v1252
    %v1317 = vmul.f32 %v921, %v1253
    %v1318 = vmul.f32 %v924, %v1254
    %v1319 = vmul.f32 %v927, %v1255
    %v1320 = vmul.f32 %v930, %v1256
    %v1321 = vmul.f32 %v933, %v1257
    %v1322 = vmul.f32 %v936, %v1258
    %v1323 = vmul.f32 %v939, %v1259
    %v1324 = vmul.f32 %v942, %v1260
    %v1325 = vmul.f32 %v945, %v1261
    %v1326 = vmul.f32 %v948, %v1262
    %v1327 = vmul.f32 %v951, %v1263
    %v1328 = vmul.f32 %v954, %v1264
    %v1329 = vmul.f32 %v957, %v1265
    %v1330 = vmul.f32 %v960, %v1266
    %v1331 = vmul.f32 %v963, %v1267
    %v1332 = vmul.f32 %v966, %v1268
    %v1333 = vmul.f32 %v969, %v1269
    %v1334 = vmul.f32 %v972, %v1270
    %v1335 = vmul.f32 %v975, %v1271
    %v1336 = vmul.f32 %v978, %v1272
    %v1337 = vmul.f32 %v981, %v1273
    %v1338 = vmul.f32 %v984, %v1274
    %v1339 = vmul.f32 %v987, %v1275
    %v1340 = vmul.f32 %v990, %v1276
    %v1341 = vmul.f32 %v993, %v1277
    %v1342 = vmul.f32 %v996, %v1278
    %v1343 = vmul.f32 %v999, %v1279
    %v1344 = vmul.f32 %v1002, %v1280
    %v1345 = vmul.f32 %v1005, %v1281
    %v1346 = vmul.f32 %v1008, %v1282
    %v1347 = vmul.f32 %v1011, %v1283
    %v1348 = vmul.f32 %v1014, %v1284
    %v1349 = vmul.f32 %v1017, %v1285
    %v1350 = vmul.f32 %v1020, %v1286
    %v1351 = vmul.f32 %v1023, %v1287
    %v1352 = vmul.f32 %v1026, %v1288
    %v1353 = vmul.f32 %v1029, %v1289
    %v1354 = vmul.f32 %v1032, %v1290
    %v1355 = vmul.f32 %v1035, %v1291
    %vm1356 = vcmask 7168
    %1357 = vst.msk [vmem:[%s4] sm:$0xff] %vm1356, %v1292
    %1358 = vst.msk [vmem:[%s4 + $0x8] sm:$0xff] %vm1356, %v1293
    %1359 = vst.msk [vmem:[%s4 + $0x10] sm:$0xff] %vm1356, %v1294
    %1360 = vst.msk [vmem:[%s4 + $0x18] sm:$0xff] %vm1356, %v1295
    %1361 = vst.msk [vmem:[%s4 + $0x20] sm:$0xff] %vm1356, %v1296
    %1362 = vst.msk [vmem:[%s4 + $0x28] sm:$0xff] %vm1356, %v1297
    %1363 = vst.msk [vmem:[%s4 + $0x30] sm:$0xff] %vm1356, %v1298
    %1364 = vst.msk [vmem:[%s4 + $0x38] sm:$0xff] %vm1356, %v1299
    %1365 = vst.msk [vmem:[%s4 + $0x40] sm:$0xff] %vm1356, %v1300
    %1366 = vst.msk [vmem:[%s4 + $0x48] sm:$0xff] %vm1356, %v1301
    %1367 = vst.msk [vmem:[%s4 + $0x50] sm:$0xff] %vm1356, %v1302
    %1368 = vst.msk [vmem:[%s4 + $0x58] sm:$0xff] %vm1356, %v1303
    %1369 = vst.msk [vmem:[%s4 + $0x60] sm:$0xff] %vm1356, %v1304
    %1370 = vst.msk [vmem:[%s4 + $0x68] sm:$0xff] %vm1356, %v1305
    %1371 = vst.msk [vmem:[%s4 + $0x70] sm:$0xff] %vm1356, %v1306
    %1372 = vst.msk [vmem:[%s4 + $0x78] sm:$0xff] %vm1356, %v1307
    %1373 = vst.msk [vmem:[%s4 + $0x80] sm:$0xff] %vm1356, %v1308
    %1374 = vst.msk [vmem:[%s4 + $0x88] sm:$0xff] %vm1356, %v1309
    %1375 = vst.msk [vmem:[%s4 + $0x90] sm:$0xff] %vm1356, %v1310
    %1376 = vst.msk [vmem:[%s4 + $0x98] sm:$0xff] %vm1356, %v1311
    %1377 = vst.msk [vmem:[%s4 + $0xa0] sm:$0xff] %vm1356, %v1312
    %1378 = vst.msk [vmem:[%s4 + $0xa8] sm:$0xff] %vm1356, %v1313
    %1379 = vst.msk [vmem:[%s4 + $0xb0] sm:$0xff] %vm1356, %v1314
    %1380 = vst.msk [vmem:[%s4 + $0xb8] sm:$0xff] %vm1356, %v1315
    %1381 = vst.msk [vmem:[%s4 + $0xc0] sm:$0xff] %vm1356, %v1316
    %1382 = vst.msk [vmem:[%s4 + $0xc8] sm:$0xff] %vm1356, %v1317
    %1383 = vst.msk [vmem:[%s4 + $0xd0] sm:$0xff] %vm1356, %v1318
    %1384 = vst.msk [vmem:[%s4 + $0xd8] sm:$0xff] %vm1356, %v1319
    %1385 = vst.msk [vmem:[%s4 + $0xe0] sm:$0xff] %vm1356, %v1320
    %1386 = vst.msk [vmem:[%s4 + $0xe8] sm:$0xff] %vm1356, %v1321
    %1387 = vst.msk [vmem:[%s4 + $0xf0] sm:$0xff] %vm1356, %v1322
    %1388 = vst.msk [vmem:[%s4 + $0xf8] sm:$0xff] %vm1356, %v1323
    %1389 = vst.msk [vmem:[%s4 + $0x100] sm:$0xff] %vm1356, %v1324
    %1390 = vst.msk [vmem:[%s4 + $0x108] sm:$0xff] %vm1356, %v1325
    %1391 = vst.msk [vmem:[%s4 + $0x110] sm:$0xff] %vm1356, %v1326
    %1392 = vst.msk [vmem:[%s4 + $0x118] sm:$0xff] %vm1356, %v1327
    %1393 = vst.msk [vmem:[%s4 + $0x120] sm:$0xff] %vm1356, %v1328
    %1394 = vst.msk [vmem:[%s4 + $0x128] sm:$0xff] %vm1356, %v1329
    %1395 = vst.msk [vmem:[%s4 + $0x130] sm:$0xff] %vm1356, %v1330
    %1396 = vst.msk [vmem:[%s4 + $0x138] sm:$0xff] %vm1356, %v1331
    %1397 = vst.msk [vmem:[%s4 + $0x140] sm:$0xff] %vm1356, %v1332
    %1398 = vst.msk [vmem:[%s4 + $0x148] sm:$0xff] %vm1356, %v1333
    %1399 = vst.msk [vmem:[%s4 + $0x150] sm:$0xff] %vm1356, %v1334
    %1400 = vst.msk [vmem:[%s4 + $0x158] sm:$0xff] %vm1356, %v1335
    %1401 = vst.msk [vmem:[%s4 + $0x160] sm:$0xff] %vm1356, %v1336
    %1402 = vst.msk [vmem:[%s4 + $0x168] sm:$0xff] %vm1356, %v1337
    %1403 = vst.msk [vmem:[%s4 + $0x170] sm:$0xff] %vm1356, %v1338
    %1404 = vst.msk [vmem:[%s4 + $0x178] sm:$0xff] %vm1356, %v1339
    %1405 = vst.msk [vmem:[%s4 + $0x180] sm:$0xff] %vm1356, %v1340
    %1406 = vst.msk [vmem:[%s4 + $0x188] sm:$0xff] %vm1356, %v1341
    %1407 = vst.msk [vmem:[%s4 + $0x190] sm:$0xff] %vm1356, %v1342
    %1408 = vst.msk [vmem:[%s4 + $0x198] sm:$0xff] %vm1356, %v1343
    %1409 = vst.msk [vmem:[%s4 + $0x1a0] sm:$0xff] %vm1356, %v1344
    %1410 = vst.msk [vmem:[%s4 + $0x1a8] sm:$0xff] %vm1356, %v1345
    %1411 = vst.msk [vmem:[%s4 + $0x1b0] sm:$0xff] %vm1356, %v1346
    %1412 = vst.msk [vmem:[%s4 + $0x1b8] sm:$0xff] %vm1356, %v1347
    %1413 = vst.msk [vmem:[%s4 + $0x1c0] sm:$0xff] %vm1356, %v1348
    %1414 = vst.msk [vmem:[%s4 + $0x1c8] sm:$0xff] %vm1356, %v1349
    %1415 = vst.msk [vmem:[%s4 + $0x1d0] sm:$0xff] %vm1356, %v1350
    %1416 = vst.msk [vmem:[%s4 + $0x1d8] sm:$0xff] %vm1356, %v1351
    %1417 = vst.msk [vmem:[%s4 + $0x1e0] sm:$0xff] %vm1356, %v1352
    %1418 = vst.msk [vmem:[%s4 + $0x1e8] sm:$0xff] %vm1356, %v1353
    %1419 = vst.msk [vmem:[%s4 + $0x1f0] sm:$0xff] %vm1356, %v1354
    %1420 = vst.msk [vmem:[%s4 + $0x1f8] sm:$0xff] %vm1356, %v1355
    // Predicated region
    $region22: #{tpu_custom_call.1} parent=1 // pred_check
      _
    $region23: #{tpu_custom_call.1} parent=1 // pred_check_branch
      %1422 = sbr.rel (0) target = $region25
    $region24: #{tpu_custom_call.1} parent=1 // pred_region
      _
    $region25: #{tpu_custom_call.1} parent=1 // pred_fallthru
      _
    // Predicated region
    $region26: #{tpu_custom_call.1} parent=1 // pred_check
      _
    $region27: #{tpu_custom_call.1} parent=1 // pred_check_branch
      %1424 = sbr.rel (0) target = $region29
    $region28: #{tpu_custom_call.1} parent=1 // pred_region
      _
    $region29: #{tpu_custom_call.1} parent=1 // pred_fallthru
      _
    %1425 = vsyncpa [#allocation3], 1

</llo_original>
